<compile_context>
chip_gen: v7x
topology: tpu7x:2x2x1
jax: 0.10.0
libtpu: 0.0.40
codegen_flags: <defaults>
</compile_context>

<pallas_src>
from functools import partial

import numpy as np

import jax
import jax.numpy as jnp
from jax.experimental import pallas as pl
from jax.experimental.pallas import tpu as pltpu


def _res_block_kernel(x_ref, b1_ref, b2_ref, bd_ref,
                      bias1_ref, bias2_ref, biasd_ref,
                      skip_ref, down_ref,
                      xpad_ref, hpad_ref,
                      *, H, W, Ho, Wo, Cin, Cout):
    """Fused ResEncoderBlock forward for one batch element.

    x_ref     : (1, H, W*Cin)        input image, channels flattened into lanes
    b1_ref    : (3, W*Cin,  W*Cout)  bf16 banded weight, conv1 (BN scale folded)
    b2_ref    : (3, W*Cout, W*Cout)  bf16 banded weight, conv2
    bd_ref    : (3, W*Cin,  Wo*Cout) bf16 banded weight, stride-2 down conv
    bias*_ref : (1, W*Cout)/(1, Wo*Cout) f32 lane-replicated folded BN biases
    skip_ref  : (1, H,  W*Cout)      for_skip  = convs_before_skip(x)
    down_ref  : (1, Ho, Wo*Cout)     for_next  = res_and_down(x)
    xpad_ref  : (H+2, W*Cin)  f32 scratch -- height-padded x
    hpad_ref  : (H+2, W*Cout) f32 scratch -- height-padded conv1 output
    """
    bf16 = jnp.bfloat16

    # ---- build the height halo for x in VMEM (width padding is folded into
    #      the banded weights, so only the border rows need explicit zeros) ---
    zx = jnp.zeros((1, W * Cin), jnp.float32)
    xpad_ref[0:1, :] = zx
    xpad_ref[H + 1:H + 2, :] = zx
    xpad_ref[1:H + 1, :] = x_ref[0]

    # ---- conv1 (k=3, s=1) + folded BN + ReLU:  3 banded MXU matmuls ---------
    acc = jnp.dot(xpad_ref[0:H, :].astype(bf16), b1_ref[0],
                  preferred_element_type=jnp.float32)
    for kh in range(1, 3):
        acc = acc + jnp.dot(xpad_ref[kh:kh + H, :].astype(bf16), b1_ref[kh],
                            preferred_element_type=jnp.float32)
    h1 = jnp.maximum(acc + bias1_ref[...], 0.0)

    # ---- conv2 input halo (intermediate activation stays in VMEM) ----------
    zh = jnp.zeros((1, W * Cout), jnp.float32)
    hpad_ref[0:1, :] = zh
    hpad_ref[H + 1:H + 2, :] = zh
    hpad_ref[1:H + 1, :] = h1

    # ---- conv2 (k=3, s=1) + folded BN + ReLU  ->  for_skip ------------------
    acc = jnp.dot(hpad_ref[0:H, :].astype(bf16), b2_ref[0],
                  preferred_element_type=jnp.float32)
    for kh in range(1, 3):
        acc = acc + jnp.dot(hpad_ref[kh:kh + H, :].astype(bf16), b2_ref[kh],
                            preferred_element_type=jnp.float32)
    skip_ref[0] = jnp.maximum(acc + bias2_ref[...], 0.0)

    # ---- res_and_down: stride-2 conv on the ORIGINAL x  ->  for_next --------
    acc = jnp.dot(xpad_ref[pl.ds(0, Ho, stride=2), :].astype(bf16), bd_ref[0],
                  preferred_element_type=jnp.float32)
    for kh in range(1, 3):
        rows = xpad_ref[pl.ds(kh, Ho, stride=2), :].astype(bf16)  # rows kh, kh+2, ...
        acc = acc + jnp.dot(rows, bd_ref[kh],
                            preferred_element_type=jnp.float32)
    down_ref[0] = jnp.maximum(acc + biasd_ref[...], 0.0)


def res_encoder_block(x_nhwc, params):
    """Fused block; returns (for_next_layer, for_skip) in NHWC."""
    N, H, W, Cin = x_nhwc.shape
    Cout = params["cout"]
    Ho, Wo = H // 2, W // 2
    x_flat = x_nhwc.reshape(N, H, W * Cin)     # contiguous -> free reshape

    kernel = partial(_res_block_kernel, H=H, W=W, Ho=Ho, Wo=Wo, Cin=Cin, Cout=Cout)
    # NOTE: at realistic resolutions, tile H into row strips with a 2-row halo
    # (overlapping index_map) instead of one full-image block per grid step.
    skip, down = pl.pallas_call(
        kernel,
        out_shape=(jax.ShapeDtypeStruct((N, H, W * Cout), jnp.float32),
                   jax.ShapeDtypeStruct((N, Ho, Wo * Cout), jnp.float32)),
        grid=(N,),
        in_specs=[
            pl.BlockSpec((1, H, W * Cin), lambda n: (n, 0, 0)),
            pl.BlockSpec((3, W * Cin, W * Cout), lambda n: (0, 0, 0)),
            pl.BlockSpec((3, W * Cout, W * Cout), lambda n: (0, 0, 0)),
            pl.BlockSpec((3, W * Cin, Wo * Cout), lambda n: (0, 0, 0)),
            pl.BlockSpec((1, W * Cout), lambda n: (0, 0)),
            pl.BlockSpec((1, W * Cout), lambda n: (0, 0)),
            pl.BlockSpec((1, Wo * Cout), lambda n: (0, 0)),
        ],
        out_specs=(pl.BlockSpec((1, H, W * Cout), lambda n: (n, 0, 0)),
                   pl.BlockSpec((1, Ho, Wo * Cout), lambda n: (n, 0, 0))),
        scratch_shapes=[pltpu.VMEM((H + 2, W * Cin), jnp.float32),
                        pltpu.VMEM((H + 2, W * Cout), jnp.float32)],
        compiler_params=pltpu.CompilerParams(
            dimension_semantics=("parallel",)),
    )(x_flat, params["B1"], params["B2"], params["Bd"],
      params["bias1"], params["bias2"], params["biasd"])

    for_skip = skip.reshape(N, H, W, Cout)
    for_next = down.reshape(N, Ho, Wo, Cout)
    return for_next, for_skip


# --------------------------- host-side param prep ---------------------------

def make_cna_params(key, cin, cout, eps=1e-5):
    """Synthetic Conv2d(k=3) + BatchNorm2d(eval) params, BN folded into (w, b)."""
    k = jax.random.split(key, 6)
    w = jax.random.normal(k[0], (3, 3, cin, cout), jnp.float32) / np.sqrt(9.0 * cin)
    b_conv = 0.1 * jax.random.normal(k[1], (cout,), jnp.float32)
    gamma = 1.0 + 0.1 * jax.random.normal(k[2], (cout,), jnp.float32)
    beta = 0.1 * jax.random.normal(k[3], (cout,), jnp.float32)
    run_mean = 0.1 * jax.random.normal(k[4], (cout,), jnp.float32)
    run_var = jnp.abs(jax.random.normal(k[5], (cout,), jnp.float32)) + 0.5
    scale = gamma / jnp.sqrt(run_var + eps)
    w_folded = w * scale[None, None, None, :]           # BN scale -> conv weight
    bias_folded = (b_conv - run_mean) * scale + beta    # BN shift -> bias
    return w_folded, bias_folded


def _banded_weight(w_folded, w_in, w_out, stride):
    """Fold the kw taps + width zero-padding into block-Toeplitz band matrices.

    w_folded: (3, 3, Cin, Cout) HWIO conv weight (BN scale already folded).
    Returns (3, w_in*Cin, w_out*Cout) bf16: one band per kernel row kh, so the
    3x3 conv over a row block becomes  sum_kh  rows[kh] @ band[kh]  (lane-dense).
    """
    wf = np.asarray(w_folded, np.float32)
    _, _, cin, cout = wf.shape
    band = np.zeros((3, w_in * cin, w_out * cout), np.float32)
    for kh in range(3):
        for kw in range(3):
            for jo in range(w_out):
                ji = stride * jo + kw - 1            # padding = 1
                if 0 <= ji < w_in:
                    band[kh, ji * cin:(ji + 1) * cin,
                         jo * cout:(jo + 1) * cout] = wf[kh, kw]
    return jnp.asarray(band, jnp.bfloat16)


def prepare_block_params(key, cin, cout, H, W):
    """Fold BN, build banded MXU weights and lane-replicated biases (done once)."""
    k1, k2, k3 = jax.random.split(key, 3)
    w1, b1 = make_cna_params(k1, cin, cout)     # convs_before_skip[0]
    w2, b2 = make_cna_params(k2, cout, cout)    # convs_before_skip[1]
    wd, bd = make_cna_params(k3, cin, cout)     # res_and_down[0] (stride 2)
    Wo = W // 2
    params = dict(
        cout=cout,
        B1=_banded_weight(w1, W, W, 1),
        B2=_banded_weight(w2, W, W, 1),
        Bd=_banded_weight(wd, W, Wo, 2),
        bias1=jnp.tile(b1, W).reshape(1, W * cout),
        bias2=jnp.tile(b2, W).reshape(1, W * cout),
        biasd=jnp.tile(bd, Wo).reshape(1, Wo * cout),
    )
    folded = dict(w1=w1, b1=b1, w2=w2, b2=b2, wd=wd, bd=bd)
    return params, folded


def reference_forward(x_nhwc, folded):
    """Pure-XLA f32 reference of the same folded ConvNormAct stack."""
    def cna(x, w, b, stride):
        y = jax.lax.conv_general_dilated(
            x, w, window_strides=(stride, stride), padding=((1, 1), (1, 1)),
            dimension_numbers=("NHWC", "HWIO", "NHWC"))
        return jnp.maximum(y + b, 0.0)
    for_skip = cna(cna(x_nhwc, folded["w1"], folded["b1"], 1),
                   folded["w2"], folded["b2"], 1)
    for_next = cna(x_nhwc, folded["wd"], folded["bd"], 2)
    return for_next, for_skip


if __name__ == "__main__":
    key = jax.random.PRNGKey(0)
    kx, kp = jax.random.split(key)

    # ResEncoderBlock(base_fm=8, layer_num=0, fm_delay=0, layer_depth=(2,),
    #                 in_channels=4, kernel_size=3)
    N, in_channels, H, W = 2, 4, 16, 16
    base_fm = 8
    out_channels = base_fm * 2 ** 0              # delayed_fm(0, 0) = 0

    x_nchw = jax.random.normal(kx, (N, in_channels, H, W), jnp.float32)  # PyTorch layout
    x_nhwc = jnp.transpose(x_nchw, (0, 2, 3, 1))                         # kernel layout

    params, folded = prepare_block_params(kp, in_channels, out_channels, H, W)

    for_next, for_skip = res_encoder_block(x_nhwc, params)
    # back to NCHW, matching the PyTorch module's (for_next_layer, for_skip)
    for_next_nchw = jnp.transpose(for_next, (0, 3, 1, 2))
    for_skip_nchw = jnp.transpose(for_skip, (0, 3, 1, 2))
    jax.block_until_ready((for_next_nchw, for_skip_nchw))

    assert for_skip_nchw.shape == (N, out_channels, H, W)
    assert for_next_nchw.shape == (N, out_channels, H // 2, W // 2)
    assert bool(jnp.all(jnp.isfinite(for_skip_nchw)))
    assert bool(jnp.all(jnp.isfinite(for_next_nchw)))

    # validate against the f32 XLA reference (bf16 MXU operands -> loose tol)
    ref_next, ref_skip = reference_forward(x_nhwc, folded)
    err_skip = float(jnp.max(jnp.abs(for_skip - ref_skip)))
    err_next = float(jnp.max(jnp.abs(for_next - ref_next)))
    assert err_skip < 5e-2 and err_next < 5e-2, (err_skip, err_next)

    print("KERNEL_OK")
</pallas_src>

<mosaic_0001>
module attributes {stable_mosaic.version = 11 : i64} {
  func.func @_res_block_kernel(%arg0: i32, %arg1: memref<1x16x64xf32, #tpu.memory_space<vmem>>, %arg2: memref<3x64x128xbf16, #tpu.memory_space<vmem>>, %arg3: memref<3x128x128xbf16, #tpu.memory_space<vmem>>, %arg4: memref<3x64x64xbf16, #tpu.memory_space<vmem>>, %arg5: memref<1x128xf32, #tpu.memory_space<vmem>>, %arg6: memref<1x128xf32, #tpu.memory_space<vmem>>, %arg7: memref<1x64xf32, #tpu.memory_space<vmem>>, %arg8: memref<1x16x128xf32, #tpu.memory_space<vmem>>, %arg9: memref<1x8x64xf32, #tpu.memory_space<vmem>>, %arg10: memref<18x64xf32, #tpu.memory_space<vmem>>, %arg11: memref<18x128xf32, #tpu.memory_space<vmem>>) attributes {dimension_semantics = [#tpu.dimension_semantics<parallel>], iteration_bounds = array<i64: 2>, scalar_prefetch = 0 : i64, scratch_operands = 2 : i64, tpu.core_type = #tpu.core_type<tc>, window_params = [{transform_indices = @transform_0, window_bounds = array<i64: 1, 16, 64>}, {pipeline_mode = #tpu.pipeline_mode<synchronous>, transform_indices = @transform_1, window_bounds = array<i64: 3, 64, 128>}, {pipeline_mode = #tpu.pipeline_mode<synchronous>, transform_indices = @transform_2, window_bounds = array<i64: 3, 128, 128>}, {pipeline_mode = #tpu.pipeline_mode<synchronous>, transform_indices = @transform_3, window_bounds = array<i64: 3, 64, 64>}, {pipeline_mode = #tpu.pipeline_mode<synchronous>, transform_indices = @transform_4, window_bounds = array<i64: 1, 128>}, {pipeline_mode = #tpu.pipeline_mode<synchronous>, transform_indices = @transform_5, window_bounds = array<i64: 1, 128>}, {pipeline_mode = #tpu.pipeline_mode<synchronous>, transform_indices = @transform_6, window_bounds = array<i64: 1, 64>}, {transform_indices = @transform_7, window_bounds = array<i64: 1, 16, 128>}, {transform_indices = @transform_8, window_bounds = array<i64: 1, 8, 64>}]} {
    %cst = arith.constant 0.000000e+00 : f32
    %0 = vector.broadcast %cst : f32 to vector<1x64xf32>
    %c0 = arith.constant 0 : index
    %c0_0 = arith.constant 0 : index
    %1 = vector.load %arg10[%c0, %c0_0] : memref<18x64xf32, #tpu.memory_space<vmem>>, vector<1x64xf32>
    tpu.vector_store %arg10[%c0, %c0_0], %0 {strides = array<i32>} : memref<18x64xf32, #tpu.memory_space<vmem>>, vector<1x64xf32>,
    %c17 = arith.constant 17 : index
    %c0_1 = arith.constant 0 : index
    %2 = vector.load %arg10[%c17, %c0_1] : memref<18x64xf32, #tpu.memory_space<vmem>>, vector<1x64xf32>
    tpu.vector_store %arg10[%c17, %c0_1], %0 {strides = array<i32>} : memref<18x64xf32, #tpu.memory_space<vmem>>, vector<1x64xf32>,
    %c0_2 = arith.constant 0 : index
    %c0_3 = arith.constant 0 : index
    %c0_4 = arith.constant 0 : index
    %3 = vector.load %arg1[%c0_2, %c0_3, %c0_4] : memref<1x16x64xf32, #tpu.memory_space<vmem>>, vector<1x16x64xf32>
    %4 = vector.shape_cast %3 : vector<1x16x64xf32> to vector<16x64xf32>
    %c1 = arith.constant 1 : index
    %c0_5 = arith.constant 0 : index
    %5 = vector.load %arg10[%c1, %c0_5] : memref<18x64xf32, #tpu.memory_space<vmem>>, vector<16x64xf32>
    tpu.vector_store %arg10[%c1, %c0_5], %4 {strides = array<i32>} : memref<18x64xf32, #tpu.memory_space<vmem>>, vector<16x64xf32>,
    %c0_6 = arith.constant 0 : index
    %c0_7 = arith.constant 0 : index
    %6 = vector.load %arg10[%c0_6, %c0_7] : memref<18x64xf32, #tpu.memory_space<vmem>>, vector<16x64xf32>
    %7 = arith.truncf %6 : vector<16x64xf32> to vector<16x64xbf16>
    %c0_8 = arith.constant 0 : index
    %c0_9 = arith.constant 0 : index
    %c0_10 = arith.constant 0 : index
    %8 = vector.load %arg2[%c0_8, %c0_9, %c0_10] : memref<3x64x128xbf16, #tpu.memory_space<vmem>>, vector<1x64x128xbf16>
    %9 = vector.shape_cast %8 : vector<1x64x128xbf16> to vector<64x128xbf16>
    %cst_11 = arith.constant dense<0.000000e+00> : vector<16x128xf32>
    %10 = tpu.matmul %7, %9, %cst_11 {dimension_numbers = #tpu.dot_dimension_numbers<[1], [0], [0], [1], [0, 0, 1, 1], [], []>} : vector<16x64xbf16>, vector<64x128xbf16>, vector<16x128xf32> -> vector<16x128xf32>
    %c1_12 = arith.constant 1 : index
    %c0_13 = arith.constant 0 : index
    %11 = vector.load %arg10[%c1_12, %c0_13] : memref<18x64xf32, #tpu.memory_space<vmem>>, vector<16x64xf32>
    %12 = arith.truncf %11 : vector<16x64xf32> to vector<16x64xbf16>
    %c1_14 = arith.constant 1 : index
    %c0_15 = arith.constant 0 : index
    %c0_16 = arith.constant 0 : index
    %13 = vector.load %arg2[%c1_14, %c0_15, %c0_16] : memref<3x64x128xbf16, #tpu.memory_space<vmem>>, vector<1x64x128xbf16>
    %14 = vector.shape_cast %13 : vector<1x64x128xbf16> to vector<64x128xbf16>
    %cst_17 = arith.constant dense<0.000000e+00> : vector<16x128xf32>
    %15 = tpu.matmul %12, %14, %cst_17 {dimension_numbers = #tpu.dot_dimension_numbers<[1], [0], [0], [1], [0, 0, 1, 1], [], []>} : vector<16x64xbf16>, vector<64x128xbf16>, vector<16x128xf32> -> vector<16x128xf32>
    %16 = arith.addf %10, %15 : vector<16x128xf32>
    %c2 = arith.constant 2 : index
    %c0_18 = arith.constant 0 : index
    %17 = vector.load %arg10[%c2, %c0_18] : memref<18x64xf32, #tpu.memory_space<vmem>>, vector<16x64xf32>
    %18 = arith.truncf %17 : vector<16x64xf32> to vector<16x64xbf16>
    %c2_19 = arith.constant 2 : index
    %c0_20 = arith.constant 0 : index
    %c0_21 = arith.constant 0 : index
    %19 = vector.load %arg2[%c2_19, %c0_20, %c0_21] : memref<3x64x128xbf16, #tpu.memory_space<vmem>>, vector<1x64x128xbf16>
    %20 = vector.shape_cast %19 : vector<1x64x128xbf16> to vector<64x128xbf16>
    %cst_22 = arith.constant dense<0.000000e+00> : vector<16x128xf32>
    %21 = tpu.matmul %18, %20, %cst_22 {dimension_numbers = #tpu.dot_dimension_numbers<[1], [0], [0], [1], [0, 0, 1, 1], [], []>} : vector<16x64xbf16>, vector<64x128xbf16>, vector<16x128xf32> -> vector<16x128xf32>
    %22 = arith.addf %16, %21 : vector<16x128xf32>
    %c0_23 = arith.constant 0 : index
    %c0_24 = arith.constant 0 : index
    %23 = vector.load %arg5[%c0_23, %c0_24] : memref<1x128xf32, #tpu.memory_space<vmem>>, vector<1x128xf32>
    %24 = vector.broadcast %23 : vector<1x128xf32> to vector<16x128xf32>
    %25 = arith.addf %22, %24 : vector<16x128xf32>
    %cst_25 = arith.constant 0.000000e+00 : f32
    %26 = vector.broadcast %cst_25 : f32 to vector<16x128xf32>
    %27 = arith.maximumf %25, %26 : vector<16x128xf32>
    %cst_26 = arith.constant 0.000000e+00 : f32
    %28 = vector.broadcast %cst_26 : f32 to vector<1x128xf32>
    %c0_27 = arith.constant 0 : index
    %c0_28 = arith.constant 0 : index
    %29 = vector.load %arg11[%c0_27, %c0_28] : memref<18x128xf32, #tpu.memory_space<vmem>>, vector<1x128xf32>
    tpu.vector_store %arg11[%c0_27, %c0_28], %28 {strides = array<i32>} : memref<18x128xf32, #tpu.memory_space<vmem>>, vector<1x128xf32>,
    %c17_29 = arith.constant 17 : index
    %c0_30 = arith.constant 0 : index
    %30 = vector.load %arg11[%c17_29, %c0_30] : memref<18x128xf32, #tpu.memory_space<vmem>>, vector<1x128xf32>
    tpu.vector_store %arg11[%c17_29, %c0_30], %28 {strides = array<i32>} : memref<18x128xf32, #tpu.memory_space<vmem>>, vector<1x128xf32>,
    %c1_31 = arith.constant 1 : index
    %c0_32 = arith.constant 0 : index
    %31 = vector.load %arg11[%c1_31, %c0_32] : memref<18x128xf32, #tpu.memory_space<vmem>>, vector<16x128xf32>
    tpu.vector_store %arg11[%c1_31, %c0_32], %27 {strides = array<i32>} : memref<18x128xf32, #tpu.memory_space<vmem>>, vector<16x128xf32>,
    %c0_33 = arith.constant 0 : index
    %c0_34 = arith.constant 0 : index
    %32 = vector.load %arg11[%c0_33, %c0_34] : memref<18x128xf32, #tpu.memory_space<vmem>>, vector<16x128xf32>
    %33 = arith.truncf %32 : vector<16x128xf32> to vector<16x128xbf16>
    %c0_35 = arith.constant 0 : index
    %c0_36 = arith.constant 0 : index
    %c0_37 = arith.constant 0 : index
    %34 = vector.load %arg3[%c0_35, %c0_36, %c0_37] : memref<3x128x128xbf16, #tpu.memory_space<vmem>>, vector<1x128x128xbf16>
    %35 = vector.shape_cast %34 : vector<1x128x128xbf16> to vector<128x128xbf16>
    %cst_38 = arith.constant dense<0.000000e+00> : vector<16x128xf32>
    %36 = tpu.matmul %33, %35, %cst_38 {dimension_numbers = #tpu.dot_dimension_numbers<[1], [0], [0], [1], [0, 0, 1, 1], [], []>} : vector<16x128xbf16>, vector<128x128xbf16>, vector<16x128xf32> -> vector<16x128xf32>
    %c1_39 = arith.constant 1 : index
    %c0_40 = arith.constant 0 : index
    %37 = vector.load %arg11[%c1_39, %c0_40] : memref<18x128xf32, #tpu.memory_space<vmem>>, vector<16x128xf32>
    %38 = arith.truncf %37 : vector<16x128xf32> to vector<16x128xbf16>
    %c1_41 = arith.constant 1 : index
    %c0_42 = arith.constant 0 : index
    %c0_43 = arith.constant 0 : index
    %39 = vector.load %arg3[%c1_41, %c0_42, %c0_43] : memref<3x128x128xbf16, #tpu.memory_space<vmem>>, vector<1x128x128xbf16>
    %40 = vector.shape_cast %39 : vector<1x128x128xbf16> to vector<128x128xbf16>
    %cst_44 = arith.constant dense<0.000000e+00> : vector<16x128xf32>
    %41 = tpu.matmul %38, %40, %cst_44 {dimension_numbers = #tpu.dot_dimension_numbers<[1], [0], [0], [1], [0, 0, 1, 1], [], []>} : vector<16x128xbf16>, vector<128x128xbf16>, vector<16x128xf32> -> vector<16x128xf32>
    %42 = arith.addf %36, %41 : vector<16x128xf32>
    %c2_45 = arith.constant 2 : index
    %c0_46 = arith.constant 0 : index
    %43 = vector.load %arg11[%c2_45, %c0_46] : memref<18x128xf32, #tpu.memory_space<vmem>>, vector<16x128xf32>
    %44 = arith.truncf %43 : vector<16x128xf32> to vector<16x128xbf16>
    %c2_47 = arith.constant 2 : index
    %c0_48 = arith.constant 0 : index
    %c0_49 = arith.constant 0 : index
    %45 = vector.load %arg3[%c2_47, %c0_48, %c0_49] : memref<3x128x128xbf16, #tpu.memory_space<vmem>>, vector<1x128x128xbf16>
    %46 = vector.shape_cast %45 : vector<1x128x128xbf16> to vector<128x128xbf16>
    %cst_50 = arith.constant dense<0.000000e+00> : vector<16x128xf32>
    %47 = tpu.matmul %44, %46, %cst_50 {dimension_numbers = #tpu.dot_dimension_numbers<[1], [0], [0], [1], [0, 0, 1, 1], [], []>} : vector<16x128xbf16>, vector<128x128xbf16>, vector<16x128xf32> -> vector<16x128xf32>
    %48 = arith.addf %42, %47 : vector<16x128xf32>
    %c0_51 = arith.constant 0 : index
    %c0_52 = arith.constant 0 : index
    %49 = vector.load %arg6[%c0_51, %c0_52] : memref<1x128xf32, #tpu.memory_space<vmem>>, vector<1x128xf32>
    %50 = vector.broadcast %49 : vector<1x128xf32> to vector<16x128xf32>
    %51 = arith.addf %48, %50 : vector<16x128xf32>
    %cst_53 = arith.constant 0.000000e+00 : f32
    %52 = vector.broadcast %cst_53 : f32 to vector<16x128xf32>
    %53 = arith.maximumf %51, %52 : vector<16x128xf32>
    %c0_54 = arith.constant 0 : index
    %c0_55 = arith.constant 0 : index
    %c0_56 = arith.constant 0 : index
    %54 = vector.load %arg8[%c0_54, %c0_55, %c0_56] : memref<1x16x128xf32, #tpu.memory_space<vmem>>, vector<1x16x128xf32>
    %55 = vector.shape_cast %54 : vector<1x16x128xf32> to vector<16x128xf32>
    %56 = vector.shape_cast %53 : vector<16x128xf32> to vector<1x16x128xf32>
    tpu.vector_store %arg8[%c0_54, %c0_55, %c0_56], %56 {strides = array<i32>} : memref<1x16x128xf32, #tpu.memory_space<vmem>>, vector<1x16x128xf32>,
    %c0_57 = arith.constant 0 : index
    %c0_58 = arith.constant 0 : index
    %57 = tpu.strided_load %arg10[%c0_57, %c0_58] {strides = array<i32: 2, 1>} : memref<18x64xf32, #tpu.memory_space<vmem>>, vector<8x64xf32>
    %58 = arith.truncf %57 : vector<8x64xf32> to vector<8x64xbf16>
    %c0_59 = arith.constant 0 : index
    %c0_60 = arith.constant 0 : index
    %c0_61 = arith.constant 0 : index
    %59 = vector.load %arg4[%c0_59, %c0_60, %c0_61] : memref<3x64x64xbf16, #tpu.memory_space<vmem>>, vector<1x64x64xbf16>
    %60 = vector.shape_cast %59 : vector<1x64x64xbf16> to vector<64x64xbf16>
    %cst_62 = arith.constant dense<0.000000e+00> : vector<8x64xf32>
    %61 = tpu.matmul %58, %60, %cst_62 {dimension_numbers = #tpu.dot_dimension_numbers<[1], [0], [0], [1], [0, 0, 1, 1], [], []>} : vector<8x64xbf16>, vector<64x64xbf16>, vector<8x64xf32> -> vector<8x64xf32>
    %c1_63 = arith.constant 1 : index
    %c0_64 = arith.constant 0 : index
    %62 = tpu.strided_load %arg10[%c1_63, %c0_64] {strides = array<i32: 2, 1>} : memref<18x64xf32, #tpu.memory_space<vmem>>, vector<8x64xf32>
    %63 = arith.truncf %62 : vector<8x64xf32> to vector<8x64xbf16>
    %c1_65 = arith.constant 1 : index
    %c0_66 = arith.constant 0 : index
    %c0_67 = arith.constant 0 : index
    %64 = vector.load %arg4[%c1_65, %c0_66, %c0_67] : memref<3x64x64xbf16, #tpu.memory_space<vmem>>, vector<1x64x64xbf16>
    %65 = vector.shape_cast %64 : vector<1x64x64xbf16> to vector<64x64xbf16>
    %cst_68 = arith.constant dense<0.000000e+00> : vector<8x64xf32>
    %66 = tpu.matmul %63, %65, %cst_68 {dimension_numbers = #tpu.dot_dimension_numbers<[1], [0], [0], [1], [0, 0, 1, 1], [], []>} : vector<8x64xbf16>, vector<64x64xbf16>, vector<8x64xf32> -> vector<8x64xf32>
    %67 = arith.addf %61, %66 : vector<8x64xf32>
    %c2_69 = arith.constant 2 : index
    %c0_70 = arith.constant 0 : index
    %68 = tpu.strided_load %arg10[%c2_69, %c0_70] {strides = array<i32: 2, 1>} : memref<18x64xf32, #tpu.memory_space<vmem>>, vector<8x64xf32>
    %69 = arith.truncf %68 : vector<8x64xf32> to vector<8x64xbf16>
    %c2_71 = arith.constant 2 : index
    %c0_72 = arith.constant 0 : index
    %c0_73 = arith.constant 0 : index
    %70 = vector.load %arg4[%c2_71, %c0_72, %c0_73] : memref<3x64x64xbf16, #tpu.memory_space<vmem>>, vector<1x64x64xbf16>
    %71 = vector.shape_cast %70 : vector<1x64x64xbf16> to vector<64x64xbf16>
    %cst_74 = arith.constant dense<0.000000e+00> : vector<8x64xf32>
    %72 = tpu.matmul %69, %71, %cst_74 {dimension_numbers = #tpu.dot_dimension_numbers<[1], [0], [0], [1], [0, 0, 1, 1], [], []>} : vector<8x64xbf16>, vector<64x64xbf16>, vector<8x64xf32> -> vector<8x64xf32>
    %73 = arith.addf %67, %72 : vector<8x64xf32>
    %c0_75 = arith.constant 0 : index
    %c0_76 = arith.constant 0 : index
    %74 = vector.load %arg7[%c0_75, %c0_76] : memref<1x64xf32, #tpu.memory_space<vmem>>, vector<1x64xf32>
    %75 = vector.broadcast %74 : vector<1x64xf32> to vector<8x64xf32>
    %76 = arith.addf %73, %75 : vector<8x64xf32>
    %cst_77 = arith.constant 0.000000e+00 : f32
    %77 = vector.broadcast %cst_77 : f32 to vector<8x64xf32>
    %78 = arith.maximumf %76, %77 : vector<8x64xf32>
    %c0_78 = arith.constant 0 : index
    %c0_79 = arith.constant 0 : index
    %c0_80 = arith.constant 0 : index
    %79 = vector.load %arg9[%c0_78, %c0_79, %c0_80] : memref<1x8x64xf32, #tpu.memory_space<vmem>>, vector<1x8x64xf32>
    %80 = vector.shape_cast %79 : vector<1x8x64xf32> to vector<8x64xf32>
    %81 = vector.shape_cast %78 : vector<8x64xf32> to vector<1x8x64xf32>
    tpu.vector_store %arg9[%c0_78, %c0_79, %c0_80], %81 {strides = array<i32>} : memref<1x8x64xf32, #tpu.memory_space<vmem>>, vector<1x8x64xf32>,
    return
  }
  func.func @transform_0(%arg0: i32) -> (i32, i32, i32) {
    %c0_i32 = arith.constant 0 : i32
    %c0_i32_0 = arith.constant 0 : i32
    %c0_i32_1 = arith.constant 0 : i32
    return %arg0, %c0_i32, %c0_i32_0 : i32, i32, i32
  }
  func.func @transform_1(%arg0: i32) -> (i32, i32, i32) {
    %c0_i32 = arith.constant 0 : i32
    %c0_i32_0 = arith.constant 0 : i32
    %c0_i32_1 = arith.constant 0 : i32
    %c0_i32_2 = arith.constant 0 : i32
    return %c0_i32, %c0_i32_0, %c0_i32_1 : i32, i32, i32
  }
  func.func @transform_2(%arg0: i32) -> (i32, i32, i32) {
    %c0_i32 = arith.constant 0 : i32
    %c0_i32_0 = arith.constant 0 : i32
    %c0_i32_1 = arith.constant 0 : i32
    %c0_i32_2 = arith.constant 0 : i32
    return %c0_i32, %c0_i32_0, %c0_i32_1 : i32, i32, i32
  }
  func.func @transform_3(%arg0: i32) -> (i32, i32, i32) {
    %c0_i32 = arith.constant 0 : i32
    %c0_i32_0 = arith.constant 0 : i32
    %c0_i32_1 = arith.constant 0 : i32
    %c0_i32_2 = arith.constant 0 : i32
    return %c0_i32, %c0_i32_0, %c0_i32_1 : i32, i32, i32
  }
  func.func @transform_4(%arg0: i32) -> (i32, i32) {
    %c0_i32 = arith.constant 0 : i32
    %c0_i32_0 = arith.constant 0 : i32
    %c0_i32_1 = arith.constant 0 : i32
    return %c0_i32, %c0_i32_0 : i32, i32
  }
  func.func @transform_5(%arg0: i32) -> (i32, i32) {
    %c0_i32 = arith.constant 0 : i32
    %c0_i32_0 = arith.constant 0 : i32
    %c0_i32_1 = arith.constant 0 : i32
    return %c0_i32, %c0_i32_0 : i32, i32
  }
  func.func @transform_6(%arg0: i32) -> (i32, i32) {
    %c0_i32 = arith.constant 0 : i32
    %c0_i32_0 = arith.constant 0 : i32
    %c0_i32_1 = arith.constant 0 : i32
    return %c0_i32, %c0_i32_0 : i32, i32
  }
  func.func @transform_7(%arg0: i32) -> (i32, i32, i32) {
    %c0_i32 = arith.constant 0 : i32
    %c0_i32_0 = arith.constant 0 : i32
    %c0_i32_1 = arith.constant 0 : i32
    return %arg0, %c0_i32, %c0_i32_0 : i32, i32, i32
  }
  func.func @transform_8(%arg0: i32) -> (i32, i32, i32) {
    %c0_i32 = arith.constant 0 : i32
    %c0_i32_0 = arith.constant 0 : i32
    %c0_i32_1 = arith.constant 0 : i32
    return %arg0, %c0_i32, %c0_i32_0 : i32, i32, i32
  }
}

</mosaic_0001>

<llo_original>
// kernel: tpu_custom_call.1
$region0: #{tpu_custom_call.1}
  #allocation0 [shape = 'u32[]', space=smem, size = 0x4, offset = 0x4, fixed_abs, tag = 'smem constant byte address 0x4 - core index']
  #allocation1 [shape = 'u32[144,128]{1,0:T(1,128)}', space=vmem, size = 0x12000, scoped, tag = 'internal scratch']
  #allocation2 [shape = 'f32[18,64]{1,0:T(8,128)}', space=vmem, size = 0x3000, scoped, tag = 'scratch operand']
  #allocation3 [shape = 'f32[18,128]{1,0:T(8,128)}', space=vmem, size = 0x3000, scoped, tag = 'scratch operand']
  %s0 = inlined_call_operand.hbm [shape: f32[2,16,64], index: 0, kind: input, shape index: {}]
  %s1 = inlined_call_operand.hbm [shape: bf16[3,64,128], index: 1, kind: input, shape index: {}]
  %s2 = inlined_call_operand.hbm [shape: bf16[3,128,128], index: 2, kind: input, shape index: {}]
  %s3 = inlined_call_operand.hbm [shape: bf16[3,64,64], index: 3, kind: input, shape index: {}]
  %s4 = inlined_call_operand.vmem [shape: f32[1,128], index: 4, kind: input, shape index: {}]
  %s5 = inlined_call_operand.vmem [shape: f32[1,128], index: 5, kind: input, shape index: {}]
  %s6 = inlined_call_operand.vmem [shape: f32[1,64], index: 6, kind: input, shape index: {}]
  %s7 = inlined_call_operand.hbm [shape: f32[2,16,128], index: 7, kind: output, shape index: {0}]
  %s8 = inlined_call_operand.hbm [shape: f32[2,8,64], index: 8, kind: output, shape index: {1}]
  %9 = xla_tuple %s7, %s8
  %s10 = sld [smem:[#allocation0]]
  $region85: #{tpu_custom_call.1} parent=0
    _
  %s12 = ssub.s32 1, %s10
  %s13 = scalar_select 0, %s12, %s10
  $region1: #{tpu_custom_call.1} parent=0
    #allocation4 [shape = 'u8[16384]{0}', space=vmem, size = 0x4000, scoped, tag = 'input window, operand 0']
    #allocation5 [shape = 's32[2]{0}', space=sflag, size = 0x8, scoped, tag = 'scoped memory for tpu_custom_call.1']
    #allocation6 [shape = 's32[2]{0}', space=sflag, size = 0x8, scoped, tag = 'scoped memory for tpu_custom_call.1']
    #allocation7 [shape = 'u8[49152]{0}', space=vmem, size = 0xc000, scoped, tag = 'input window, operand 1, single buffered']
    #allocation8 [shape = 's32[1]{0}', space=sflag, size = 0x4, scoped, tag = 'scoped memory for tpu_custom_call.1']
    #allocation9 [shape = 'u8[98304]{0}', space=vmem, size = 0x18000, scoped, tag = 'input window, operand 2, single buffered']
    #allocation10 [shape = 'u8[49152]{0}', space=vmem, size = 0xc000, scoped, tag = 'input window, operand 3, single buffered']
    #allocation11 [shape = 's32[1]{0}', space=sflag, size = 0x4, scoped, tag = 'scoped memory for tpu_custom_call.1']
    #allocation12 [shape = 'u8[16384]{0}', space=vmem, size = 0x4000, scoped, tag = 'output window, operand 0']
    #allocation13 [shape = 'u8[8192]{0}', space=vmem, size = 0x2000, scoped, tag = 'output window, operand 1']
    #allocation14 [shape = 's32[2]{0}', space=sflag, size = 0x8, scoped, tag = 'scoped memory for tpu_custom_call.1']
    %14 = vsyncpa [#allocation5], 0
    %s15 = scalar_lea.sflag [#allocation5], 1
    %16 = vsyncpa %s15, 0
    %17 = vsyncpa [#allocation8], 0
    %18 = vsyncpa [#allocation11], 0
    %19 = vsyncpa [#allocation6], 0
    %s20 = scalar_lea.sflag [#allocation6], 1
    %21 = vsyncpa %s20, 0
    %22 = vsyncpa [#allocation14], 0
    %s23 = scalar_lea.sflag [#allocation14], 1
    %24 = vsyncpa %s23, 0
    loop: start=0, step=1, limit=4
    $region2: #{tpu_custom_call.1} parent=1 // loop_pre_header
      _
    $region3: #{tpu_custom_call.1} parent=1 // loop_header
      %s26 = sphi 0, %s30
      %p27 = scmp.ge.s32.totalorder %s26, 4
      %s36 = sphi 0, %s38
      %s39 = sphi 0, %s36
      %s40 = sphi 0, %s39
      %s56 = sphi 0, %s40
      %s60 = sphi 0, %s60
      %s62 = sphi 0, %s60
      %s63 = sphi 0, %s62
      %s77 = sphi 0, %s63
      %s81 = sphi 0, %s81
      %s83 = sphi 0, %s81
      %s84 = sphi 0, %s83
      %s98 = sphi 0, %s84
      %s102 = sphi 0, %s102
      %s104 = sphi 0, %s102
      %s105 = sphi 0, %s104
      %s119 = sphi 0, %s105
      %s123 = sphi 0, %s123
      %s125 = sphi 0, %s123
      %s126 = sphi 0, %s125
      %s140 = sphi 0, %s126
      %s144 = sphi 0, %s144
      %s146 = sphi 0, %s144
      %s147 = sphi 0, %s146
      %s161 = sphi 0, %s147
      %s165 = sphi 0, %s165
      %s167 = sphi 0, %s165
      %s168 = sphi 0, %s167
      %s182 = sphi 0, %s168
      %s188 = sphi 0, %s190
      %s191 = sphi 0, %s188
      %s192 = sphi 0, %s191
      %s208 = sphi 0, %s192
      %s214 = sphi 0, %s216
      %s217 = sphi 0, %s214
      %s218 = sphi 0, %s217
      %s234 = sphi 0, %s218
    $region4: #{tpu_custom_call.1} parent=1 // loop_header_branch
      %29 = sbr.rel (%p27) target = $region8
    $region5: #{tpu_custom_call.1} parent=1 // loop_body
      %s31 = ssub.s32 %s26, 1
      %s32 = ssub.s32 %s26, 2
      %s33 = sadd.s32 %s26, 1
      %s34 = ssub.s32 %s26, %s33
      %p35 = scmp.eq.s32.totalorder %s34, 0
      %s37 = sadd.s32 %s36, 1
      %s38 = scalar_select %p35, %s36, %s37
      %p41 = pneg %p35
      %p42 = scmp.eq.s32.totalorder %s26, 1
      %p43 = por %p41, %p42
      %p44 = scmp.ne.s32.totalorder %s36, %s39
      %p45 = scmp.eq.s32.totalorder %s26, 0
      %p46 = por %p44, %p45
      %p47 = scmp.ne.s32.totalorder %s36, %s39
      %p48 = scmp.eq.s32.totalorder %s31, 1
      %p49 = por %p47, %p48
      %p50 = scmp.ne.s32.totalorder %s39, %s40
      %p51 = scmp.eq.s32.totalorder %s31, 0
      %p52 = por %p50, %p51
      %p53 = scmp.ne.s32.totalorder %s39, %s40
      %p54 = scmp.eq.s32.totalorder %s32, 1
      %p55 = por %p53, %p54
      %p57 = scmp.ne.s32.totalorder %s40, %s56
      %p58 = scmp.eq.s32.totalorder %s32, 0
      %p59 = por %p57, %p58
      %s61 = sadd.s32 %s60, 1
      %p64 = scmp.eq.s32.totalorder %s26, 1
      %p65 = scmp.ne.s32.totalorder %s60, %s62
      %p66 = scmp.eq.s32.totalorder %s26, 0
      %p67 = por %p65, %p66
      %p68 = scmp.ne.s32.totalorder %s60, %s62
      %p69 = scmp.eq.s32.totalorder %s31, 1
      %p70 = por %p68, %p69
      %p71 = scmp.ne.s32.totalorder %s62, %s63
      %p72 = scmp.eq.s32.totalorder %s31, 0
      %p73 = por %p71, %p72
      %p74 = scmp.ne.s32.totalorder %s62, %s63
      %p75 = scmp.eq.s32.totalorder %s32, 1
      %p76 = por %p74, %p75
      %p78 = scmp.ne.s32.totalorder %s63, %s77
      %p79 = scmp.eq.s32.totalorder %s32, 0
      %p80 = por %p78, %p79
      %s82 = sadd.s32 %s81, 1
      %p85 = scmp.eq.s32.totalorder %s26, 1
      %p86 = scmp.ne.s32.totalorder %s81, %s83
      %p87 = scmp.eq.s32.totalorder %s26, 0
      %p88 = por %p86, %p87
      %p89 = scmp.ne.s32.totalorder %s81, %s83
      %p90 = scmp.eq.s32.totalorder %s31, 1
      %p91 = por %p89, %p90
      %p92 = scmp.ne.s32.totalorder %s83, %s84
      %p93 = scmp.eq.s32.totalorder %s31, 0
      %p94 = por %p92, %p93
      %p95 = scmp.ne.s32.totalorder %s83, %s84
      %p96 = scmp.eq.s32.totalorder %s32, 1
      %p97 = por %p95, %p96
      %p99 = scmp.ne.s32.totalorder %s84, %s98
      %p100 = scmp.eq.s32.totalorder %s32, 0
      %p101 = por %p99, %p100
      %s103 = sadd.s32 %s102, 1
      %p106 = scmp.eq.s32.totalorder %s26, 1
      %p107 = scmp.ne.s32.totalorder %s102, %s104
      %p108 = scmp.eq.s32.totalorder %s26, 0
      %p109 = por %p107, %p108
      %p110 = scmp.ne.s32.totalorder %s102, %s104
      %p111 = scmp.eq.s32.totalorder %s31, 1
      %p112 = por %p110, %p111
      %p113 = scmp.ne.s32.totalorder %s104, %s105
      %p114 = scmp.eq.s32.totalorder %s31, 0
      %p115 = por %p113, %p114
      %p116 = scmp.ne.s32.totalorder %s104, %s105
      %p117 = scmp.eq.s32.totalorder %s32, 1
      %p118 = por %p116, %p117
      %p120 = scmp.ne.s32.totalorder %s105, %s119
      %p121 = scmp.eq.s32.totalorder %s32, 0
      %p122 = por %p120, %p121
      %s124 = sadd.s32 %s123, 1
      %p127 = scmp.eq.s32.totalorder %s26, 1
      %p128 = scmp.ne.s32.totalorder %s123, %s125
      %p129 = scmp.eq.s32.totalorder %s26, 0
      %p130 = por %p128, %p129
      %p131 = scmp.ne.s32.totalorder %s123, %s125
      %p132 = scmp.eq.s32.totalorder %s31, 1
      %p133 = por %p131, %p132
      %p134 = scmp.ne.s32.totalorder %s125, %s126
      %p135 = scmp.eq.s32.totalorder %s31, 0
      %p136 = por %p134, %p135
      %p137 = scmp.ne.s32.totalorder %s125, %s126
      %p138 = scmp.eq.s32.totalorder %s32, 1
      %p139 = por %p137, %p138
      %p141 = scmp.ne.s32.totalorder %s126, %s140
      %p142 = scmp.eq.s32.totalorder %s32, 0
      %p143 = por %p141, %p142
      %s145 = sadd.s32 %s144, 1
      %p148 = scmp.eq.s32.totalorder %s26, 1
      %p149 = scmp.ne.s32.totalorder %s144, %s146
      %p150 = scmp.eq.s32.totalorder %s26, 0
      %p151 = por %p149, %p150
      %p152 = scmp.ne.s32.totalorder %s144, %s146
      %p153 = scmp.eq.s32.totalorder %s31, 1
      %p154 = por %p152, %p153
      %p155 = scmp.ne.s32.totalorder %s146, %s147
      %p156 = scmp.eq.s32.totalorder %s31, 0
      %p157 = por %p155, %p156
      %p158 = scmp.ne.s32.totalorder %s146, %s147
      %p159 = scmp.eq.s32.totalorder %s32, 1
      %p160 = por %p158, %p159
      %p162 = scmp.ne.s32.totalorder %s147, %s161
      %p163 = scmp.eq.s32.totalorder %s32, 0
      %p164 = por %p162, %p163
      %s166 = sadd.s32 %s165, 1
      %p169 = scmp.eq.s32.totalorder %s26, 1
      %p170 = scmp.ne.s32.totalorder %s165, %s167
      %p171 = scmp.eq.s32.totalorder %s26, 0
      %p172 = por %p170, %p171
      %p173 = scmp.ne.s32.totalorder %s165, %s167
      %p174 = scmp.eq.s32.totalorder %s31, 1
      %p175 = por %p173, %p174
      %p176 = scmp.ne.s32.totalorder %s167, %s168
      %p177 = scmp.eq.s32.totalorder %s31, 0
      %p178 = por %p176, %p177
      %p179 = scmp.ne.s32.totalorder %s167, %s168
      %p180 = scmp.eq.s32.totalorder %s32, 1
      %p181 = por %p179, %p180
      %p183 = scmp.ne.s32.totalorder %s168, %s182
      %p184 = scmp.eq.s32.totalorder %s32, 0
      %p185 = por %p183, %p184
      %s186 = ssub.s32 %s26, %s33
      %p187 = scmp.eq.s32.totalorder %s186, 0
      %s189 = sadd.s32 %s188, 1
      %s190 = scalar_select %p187, %s188, %s189
      %p193 = pneg %p187
      %p194 = scmp.eq.s32.totalorder %s26, 1
      %p195 = por %p193, %p194
      %p196 = scmp.ne.s32.totalorder %s188, %s191
      %p197 = scmp.eq.s32.totalorder %s26, 0
      %p198 = por %p196, %p197
      %p199 = scmp.ne.s32.totalorder %s188, %s191
      %p200 = scmp.eq.s32.totalorder %s31, 1
      %p201 = por %p199, %p200
      %p202 = scmp.ne.s32.totalorder %s191, %s192
      %p203 = scmp.eq.s32.totalorder %s31, 0
      %p204 = por %p202, %p203
      %p205 = scmp.ne.s32.totalorder %s191, %s192
      %p206 = scmp.eq.s32.totalorder %s32, 1
      %p207 = por %p205, %p206
      %p209 = scmp.ne.s32.totalorder %s192, %s208
      %p210 = scmp.eq.s32.totalorder %s32, 0
      %p211 = por %p209, %p210
      %s212 = ssub.s32 %s26, %s33
      %p213 = scmp.eq.s32.totalorder %s212, 0
      %s215 = sadd.s32 %s214, 1
      %s216 = scalar_select %p213, %s214, %s215
      %p219 = pneg %p213
      %p220 = scmp.eq.s32.totalorder %s26, 1
      %p221 = por %p219, %p220
      %p222 = scmp.ne.s32.totalorder %s214, %s217
      %p223 = scmp.eq.s32.totalorder %s26, 0
      %p224 = por %p222, %p223
      %p225 = scmp.ne.s32.totalorder %s214, %s217
      %p226 = scmp.eq.s32.totalorder %s31, 1
      %p227 = por %p225, %p226
      %p228 = scmp.ne.s32.totalorder %s217, %s218
      %p229 = scmp.eq.s32.totalorder %s31, 0
      %p230 = por %p228, %p229
      %p231 = scmp.ne.s32.totalorder %s217, %s218
      %p232 = scmp.eq.s32.totalorder %s32, 1
      %p233 = por %p231, %p232
      %p235 = scmp.ne.s32.totalorder %s218, %s234
      %p236 = scmp.eq.s32.totalorder %s32, 0
      %p237 = por %p235, %p236
      %p238 = scmp.le.s32.totalorder 1, %s26
      %p239 = scmp.lt.s32.totalorder %s26, 3
      %p240 = pnand %p238, %p239
      %p241 = pneg %p240
      // Predicated region
      $region9: #{tpu_custom_call.1} parent=5 // pred_check
        _
      $region10: #{tpu_custom_call.1} parent=5 // pred_check_branch
        %243 = sbr.rel (%p240) target = $region12
      $region11: #{tpu_custom_call.1} parent=5 // pred_region
        %s244 = ssub.s32 %s26, 1
        // Predicated region
        $region13: #{tpu_custom_call.1} parent=11 // pred_check
          %p245 = pneg %p73
        $region14: #{tpu_custom_call.1} parent=11 // pred_check_branch
          %247 = sbr.rel (%p245) target = $region16
        $region15: #{tpu_custom_call.1} parent=11 // pred_region
          %s249 = ssub.s32 1536, 1536
          %250 = vsyncadd [#allocation8], %s249
          %s251 = sshll.u32 [#allocation7], 4
          %s252 = int_to_ptr.vmem [resolvable:$true] %s251
          %257 = dma.hbm_to_vmem [thread:$0]  %s1, 1536, %s252, [#allocation8], 64, 64, 4
        $region16: #{tpu_custom_call.1} parent=11 // pred_fallthru
          _
        // Predicated region
        $region17: #{tpu_custom_call.1} parent=11 // pred_check
          %p258 = pneg %p94
        $region18: #{tpu_custom_call.1} parent=11 // pred_check_branch
          %260 = sbr.rel (%p258) target = $region20
        $region19: #{tpu_custom_call.1} parent=11 // pred_region
          %s262 = ssub.s32 3072, 3072
          %263 = vsyncadd [#allocation8], %s262
          %s264 = sshll.u32 [#allocation9], 4
          %s265 = int_to_ptr.vmem [resolvable:$true] %s264
          %270 = dma.hbm_to_vmem [thread:$0]  %s2, 3072, %s265, [#allocation8], 64, 64, 4
        $region20: #{tpu_custom_call.1} parent=11 // pred_fallthru
          _
        // Predicated region
        $region21: #{tpu_custom_call.1} parent=11 // pred_check
          %p271 = pneg %p115
        $region22: #{tpu_custom_call.1} parent=11 // pred_check_branch
          %273 = sbr.rel (%p271) target = $region24
        $region23: #{tpu_custom_call.1} parent=11 // pred_region
          %s275 = ssub.s32 1536, 1536
          %276 = vsyncadd [#allocation11], %s275
          %s277 = sshll.u32 [#allocation10], 4
          %s278 = int_to_ptr.vmem [resolvable:$true] %s277
          %283 = dma.hbm_to_vmem [thread:$0]  %s3, 1536, %s278, [#allocation11], 64, 64, 4
        $region24: #{tpu_custom_call.1} parent=11 // pred_fallthru
          _
        // Predicated region
        $region25: #{tpu_custom_call.1} parent=11 // pred_check
          %p284 = pneg %p136
        $region26: #{tpu_custom_call.1} parent=11 // pred_check_branch
          %286 = sbr.rel (%p284) target = $region28
        $region27: #{tpu_custom_call.1} parent=11 // pred_region
          _
        $region28: #{tpu_custom_call.1} parent=11 // pred_fallthru
          _
        // Predicated region
        $region29: #{tpu_custom_call.1} parent=11 // pred_check
          %p287 = pneg %p157
        $region30: #{tpu_custom_call.1} parent=11 // pred_check_branch
          %289 = sbr.rel (%p287) target = $region32
        $region31: #{tpu_custom_call.1} parent=11 // pred_region
          _
        $region32: #{tpu_custom_call.1} parent=11 // pred_fallthru
          _
        // Predicated region
        $region33: #{tpu_custom_call.1} parent=11 // pred_check
          %p290 = pneg %p178
        $region34: #{tpu_custom_call.1} parent=11 // pred_check_branch
          %292 = sbr.rel (%p290) target = $region36
        $region35: #{tpu_custom_call.1} parent=11 // pred_region
          _
        $region36: #{tpu_custom_call.1} parent=11 // pred_fallthru
          _
      $region12: #{tpu_custom_call.1} parent=5 // pred_fallthru
        _
      %p293 = scmp.lt.s32.totalorder %s26, 2
      // Predicated region
      $region37: #{tpu_custom_call.1} parent=5 // pred_check
        %p294 = pneg %p293
      $region38: #{tpu_custom_call.1} parent=5 // pred_check_branch
        %296 = sbr.rel (%p294) target = $region40
      $region39: #{tpu_custom_call.1} parent=5 // pred_region
        // Predicated region
        $region41: #{tpu_custom_call.1} parent=39 // pred_check
          %p297 = pneg %p46
        $region42: #{tpu_custom_call.1} parent=39 // pred_check_branch
          %299 = sbr.rel (%p297) target = $region44
        $region43: #{tpu_custom_call.1} parent=39 // pred_region
          %s300 = sand.u32 %s36, 1
          %s301 = scalar_lea.sflag [#allocation5], %s300
          %s302 = sand.u32 %s36, 1
          %s303 = smul.addr %s302, 16
          %s304 = scalar_lea.vmem [#allocation4], %s303
          %s306 = ssub.s32 256, 256
          %307 = vsyncadd %s301, %s306
          %s308 = smul.addr %s26, 2
          %s309 = smul.addr %s308, 128
          %s310 = scalar_lea.hbm %s0, %s309
          %s311 = sshll.u32 %s304, 4
          %s312 = int_to_ptr.vmem [resolvable:$true] %s311
          %317 = dma.hbm_to_vmem [thread:$0]  %s310, 256, %s312, %s301, 128, 128, 8
        $region44: #{tpu_custom_call.1} parent=39 // pred_fallthru
          _
      $region40: #{tpu_custom_call.1} parent=5 // pred_fallthru
        _
      %p318 = scmp.le.s32.totalorder 1, %s26
      %p319 = scmp.lt.s32.totalorder %s26, 3
      %p320 = pnand %p318, %p319
      %p321 = pneg %p320
      // Predicated region
      $region45: #{tpu_custom_call.1} parent=5 // pred_check
        _
      $region46: #{tpu_custom_call.1} parent=5 // pred_check_branch
        %323 = sbr.rel (%p320) target = $region48
      $region47: #{tpu_custom_call.1} parent=5 // pred_region
        %s324 = ssub.s32 %s26, 1
        %s325 = sand.u32 %s39, 1
        %s326 = scalar_lea.sflag [#allocation5], %s325
        %s327 = sand.u32 %s39, 1
        %s328 = smul.addr %s327, 16
        %s329 = scalar_lea.vmem [#allocation4], %s328
        // Predicated region
        $region49: #{tpu_custom_call.1} parent=47 // pred_check
          %p330 = pneg %p52
        $region50: #{tpu_custom_call.1} parent=47 // pred_check_branch
          %332 = sbr.rel (%p330) target = $region52
        $region51: #{tpu_custom_call.1} parent=47 // pred_region
          %333 = dma.done %s326, 256
        $region52: #{tpu_custom_call.1} parent=47 // pred_fallthru
          _
        // Predicated region
        $region53: #{tpu_custom_call.1} parent=47 // pred_check
          %p334 = pneg %p73
        $region54: #{tpu_custom_call.1} parent=47 // pred_check_branch
          %336 = sbr.rel (%p334) target = $region56
        $region55: #{tpu_custom_call.1} parent=47 // pred_region
          %337 = dma.done [#allocation8], 1536
        $region56: #{tpu_custom_call.1} parent=47 // pred_fallthru
          _
        // Predicated region
        $region57: #{tpu_custom_call.1} parent=47 // pred_check
          %p338 = pneg %p94
        $region58: #{tpu_custom_call.1} parent=47 // pred_check_branch
          %340 = sbr.rel (%p338) target = $region60
        $region59: #{tpu_custom_call.1} parent=47 // pred_region
          %341 = dma.done [#allocation8], 3072
        $region60: #{tpu_custom_call.1} parent=47 // pred_fallthru
          _
        // Predicated region
        $region61: #{tpu_custom_call.1} parent=47 // pred_check
          %p342 = pneg %p115
        $region62: #{tpu_custom_call.1} parent=47 // pred_check_branch
          %344 = sbr.rel (%p342) target = $region64
        $region63: #{tpu_custom_call.1} parent=47 // pred_region
          %345 = dma.done [#allocation11], 1536
        $region64: #{tpu_custom_call.1} parent=47 // pred_fallthru
          _
        %s346 = sand.u32 %s39, 1
        %s347 = scalar_lea.sflag [#allocation5], %s346
        %s348 = sand.u32 %s39, 1
        %s349 = smul.addr %s348, 16
        %s350 = scalar_lea.vmem [#allocation4], %s349
        %p351 = pneg %p52
        %p352 = pneg %p49
        %p353 = pneg %p73
        %p354 = pneg %p70
        %p355 = pneg %p94
        %p356 = pneg %p91
        %p357 = pneg %p115
        %p358 = pneg %p112
        %p359 = pneg %p136
        %p360 = pneg %p133
        %p361 = pneg %p157
        %p362 = pneg %p154
        %p363 = pneg %p178
        %p364 = pneg %p175
        %p365 = pneg %p204
        %p366 = pneg %p201
        %s367 = sand.u32 %s191, 1
        %s368 = scalar_lea.sflag [#allocation6], %s367
        %s369 = sand.u32 %s191, 1
        %s370 = smul.addr %s369, 16
        %s371 = scalar_lea.vmem [#allocation12], %s370
        %p372 = pneg %p230
        %p373 = pneg %p227
        %s374 = sand.u32 %s217, 1
        %s375 = scalar_lea.sflag [#allocation14], %s374
        %s376 = sand.u32 %s217, 1
        %s377 = smul.addr %s376, 8
        %s378 = scalar_lea.vmem [#allocation13], %s377
        %vm380 = vcmask 516096
        %381 = vst.msk [vmem:[#allocation2] sm:$0x1] %vm380, 0.0
        %382 = vst.msk [vmem:[#allocation2 + $0x11] sm:$0x1] %vm380, 0.0
        %v383 = vld [vmem:[%s329] sm:$0xff]
        %v384 = vld [vmem:[%s329 + $0x8] sm:$0xff]
        %vm385 = vcmask 523264
        %386 = vst.msk [vmem:[#allocation2 + $0x1] sm:$0xff] %vm385, %v383
        %387 = vst.msk [vmem:[#allocation2 + $0x9] sm:$0xff] %vm385, %v384
        %v388 = vld [vmem:[#allocation2] sm:$0xff]
        %v389 = vld [vmem:[#allocation2 + $0x8] sm:$0xff]
        %v390 = vpack.c.bf16 %v389, %v388
        %v391 = vld [vmem:[#allocation7] sm:$0xf]
        %v392 = vld [vmem:[#allocation7 + $0x4] sm:$0xf]
        %v393 = vld [vmem:[#allocation7 + $0x8] sm:$0xf]
        %v394 = vld [vmem:[#allocation7 + $0xc] sm:$0xf]
        %v395 = vld [vmem:[#allocation7 + $0x10] sm:$0xf]
        %v396 = vld [vmem:[#allocation7 + $0x14] sm:$0xf]
        %v397 = vld [vmem:[#allocation7 + $0x18] sm:$0xf]
        %v398 = vld [vmem:[#allocation7 + $0x1c] sm:$0xf]
        %v399 = vld [vmem:[#allocation2 + $0x1] sm:$0xff]
        %v400 = vld [vmem:[#allocation2 + $0x9] sm:$0xff]
        %v401 = vpack.c.bf16 %v400, %v399
        %s402 = scalar_lea.vmem [#allocation7], 32
        %v403 = vld [vmem:[%s402] sm:$0xf]
        %v404 = vld [vmem:[%s402 + $0x4] sm:$0xf]
        %v405 = vld [vmem:[%s402 + $0x8] sm:$0xf]
        %v406 = vld [vmem:[%s402 + $0xc] sm:$0xf]
        %v407 = vld [vmem:[%s402 + $0x10] sm:$0xf]
        %v408 = vld [vmem:[%s402 + $0x14] sm:$0xf]
        %v409 = vld [vmem:[%s402 + $0x18] sm:$0xf]
        %v410 = vld [vmem:[%s402 + $0x1c] sm:$0xf]
        %v419 = vunpack.c.l.b16 %v403
        %v420 = vunpack.c.l.b16 %v404
        %v421 = vunpack.c.l.b16 %v405
        %v422 = vunpack.c.l.b16 %v406
        %v423 = vunpack.c.l.b16 %v407
        %v424 = vunpack.c.l.b16 %v408
        %v425 = vunpack.c.l.b16 %v409
        %v426 = vunpack.c.l.b16 %v410
        %v427 = vpack.c.b16 %v420, %v419
        %v428 = vpack.c.b16 %v422, %v421
        %v429 = vpack.c.b16 %v424, %v423
        %v430 = vpack.c.b16 %v426, %v425
        %v436 = vsel %vm385, %v401, 0
        %438 = vmatprep.subr.bf16.mxu0 0
        %439 = vmatpush1.bf16.msra.mxu0 %v427
        %440 = vmatprep.subr.bf16.mxu0 0
        %441 = vmatpush1.bf16.msra.mxu0 %v428
        %442 = vmatprep.subr.bf16.mxu0 0
        %443 = vmatpush1.bf16.msra.mxu0 %v429
        %444 = vmatprep.subr.bf16.mxu0 0
        %445 = vmatpush1.bf16.msra.mxu0 %v430
        %446 = vmatprep.subr.bf16.mxu0 0
        %447 = vmatpush1.bf16.msra.mxu0 0
        %448 = vmatprep.subr.bf16.mxu0 0
        %449 = vmatpush1.bf16.msra.mxu0 0
        %450 = vmatprep.subr.bf16.mxu0 0
        %451 = vmatpush1.bf16.msra.mxu0 0
        %452 = vmatprep.subr.bf16.mxu0 0
        %453 = vmatpush1.bf16.msra.mxu0 0
        %454 = vmatprep.subr.bf16.mxu0 0
        %455 = vmatpush1.bf16.msra.mxu0 0
        %456 = vmatprep.subr.bf16.mxu0 0
        %457 = vmatpush1.bf16.msra.mxu0 0
        %458 = vmatprep.subr.bf16.mxu0 0
        %459 = vmatpush1.bf16.msra.mxu0 0
        %460 = vmatprep.subr.bf16.mxu0 0
        %461 = vmatpush1.bf16.msra.mxu0 0
        %462 = vmatprep.subr.bf16.mxu0 0
        %463 = vmatpush1.bf16.msra.mxu0 0
        %464 = vmatprep.subr.bf16.mxu0 0
        %465 = vmatpush1.bf16.msra.mxu0 0
        %466 = vmatprep.subr.bf16.mxu0 0
        %467 = vmatpush1.bf16.msra.mxu0 0
        %468 = vmatprep.subr.bf16.mxu0 0
        %469 = vmatpush1.bf16.msra.mxu0 0
        %470 = vmatprep.mubr.bf16.mxu0 0
        %471 = vmatmul.mubr.bf16.gmra.mrb[0].mxu0 %v436
        %v472 = vpop.f32.mrb[0].mxu0
        %v473 = vadd.f32 0.0, %v472
        %v474 = vpop.f32.mrb[0].mxu0
        %v475 = vpop.f32.mrb[0].mxu0
        %v476 = vadd.f32 0.0, %v475
        %v477 = vpop.f32.mrb[0].mxu0
        %478 = vdwg.mxu0
        %v487 = vunpack.c.l.b16 %v391
        %v488 = vunpack.c.l.b16 %v392
        %v489 = vunpack.c.l.b16 %v393
        %v490 = vunpack.c.l.b16 %v394
        %v491 = vunpack.c.l.b16 %v395
        %v492 = vunpack.c.l.b16 %v396
        %v493 = vunpack.c.l.b16 %v397
        %v494 = vunpack.c.l.b16 %v398
        %v495 = vpack.c.b16 %v488, %v487
        %v496 = vpack.c.b16 %v490, %v489
        %v497 = vpack.c.b16 %v492, %v491
        %v498 = vpack.c.b16 %v494, %v493
        %v504 = vsel %vm385, %v390, 0
        %506 = vmatprep.subr.bf16.mxu0 0
        %507 = vmatpush1.bf16.msra.mxu0 %v495
        %508 = vmatprep.subr.bf16.mxu0 0
        %509 = vmatpush1.bf16.msra.mxu0 %v496
        %510 = vmatprep.subr.bf16.mxu0 0
        %511 = vmatpush1.bf16.msra.mxu0 %v497
        %512 = vmatprep.subr.bf16.mxu0 0
        %513 = vmatpush1.bf16.msra.mxu0 %v498
        %514 = vmatprep.subr.bf16.mxu0 0
        %515 = vmatpush1.bf16.msra.mxu0 0
        %516 = vmatprep.subr.bf16.mxu0 0
        %517 = vmatpush1.bf16.msra.mxu0 0
        %518 = vmatprep.subr.bf16.mxu0 0
        %519 = vmatpush1.bf16.msra.mxu0 0
        %520 = vmatprep.subr.bf16.mxu0 0
        %521 = vmatpush1.bf16.msra.mxu0 0
        %522 = vmatprep.subr.bf16.mxu0 0
        %523 = vmatpush1.bf16.msra.mxu0 0
        %524 = vmatprep.subr.bf16.mxu0 0
        %525 = vmatpush1.bf16.msra.mxu0 0
        %526 = vmatprep.subr.bf16.mxu0 0
        %527 = vmatpush1.bf16.msra.mxu0 0
        %528 = vmatprep.subr.bf16.mxu0 0
        %529 = vmatpush1.bf16.msra.mxu0 0
        %530 = vmatprep.subr.bf16.mxu0 0
        %531 = vmatpush1.bf16.msra.mxu0 0
        %532 = vmatprep.subr.bf16.mxu0 0
        %533 = vmatpush1.bf16.msra.mxu0 0
        %534 = vmatprep.subr.bf16.mxu0 0
        %535 = vmatpush1.bf16.msra.mxu0 0
        %536 = vmatprep.subr.bf16.mxu0 0
        %537 = vmatpush1.bf16.msra.mxu0 0
        %538 = vmatprep.mubr.bf16.mxu0 0
        %539 = vmatmul.mubr.bf16.gmra.mrb[0].mxu0 %v504
        %v540 = vpop.f32.mrb[0].mxu0
        %v541 = vadd.f32 %v473, %v540
        %v542 = vpop.f32.mrb[0].mxu0
        %v543 = vpop.f32.mrb[0].mxu0
        %v544 = vadd.f32 %v476, %v543
        %v545 = vpop.f32.mrb[0].mxu0
        %546 = vdwg.mxu0
        %v547 = vld [vmem:[#allocation2 + $0x2] sm:$0xff]
        %v548 = vld [vmem:[#allocation2 + $0xa] sm:$0xff]
        %v549 = vpack.c.bf16 %v548, %v547
        %s550 = scalar_lea.vmem [#allocation7], 64
        %v551 = vld [vmem:[%s550] sm:$0xf]
        %v552 = vld [vmem:[%s550 + $0x4] sm:$0xf]
        %v553 = vld [vmem:[%s550 + $0x8] sm:$0xf]
        %v554 = vld [vmem:[%s550 + $0xc] sm:$0xf]
        %v555 = vld [vmem:[%s550 + $0x10] sm:$0xf]
        %v556 = vld [vmem:[%s550 + $0x14] sm:$0xf]
        %v557 = vld [vmem:[%s550 + $0x18] sm:$0xf]
        %v558 = vld [vmem:[%s550 + $0x1c] sm:$0xf]
        %v567 = vunpack.c.l.b16 %v551
        %v568 = vunpack.c.l.b16 %v552
        %v569 = vunpack.c.l.b16 %v553
        %v570 = vunpack.c.l.b16 %v554
        %v571 = vunpack.c.l.b16 %v555
        %v572 = vunpack.c.l.b16 %v556
        %v573 = vunpack.c.l.b16 %v557
        %v574 = vunpack.c.l.b16 %v558
        %v575 = vpack.c.b16 %v568, %v567
        %v576 = vpack.c.b16 %v570, %v569
        %v577 = vpack.c.b16 %v572, %v571
        %v578 = vpack.c.b16 %v574, %v573
        %v584 = vsel %vm385, %v549, 0
        %586 = vmatprep.subr.bf16.mxu0 0
        %587 = vmatpush1.bf16.msra.mxu0 %v575
        %588 = vmatprep.subr.bf16.mxu0 0
        %589 = vmatpush1.bf16.msra.mxu0 %v576
        %590 = vmatprep.subr.bf16.mxu0 0
        %591 = vmatpush1.bf16.msra.mxu0 %v577
        %592 = vmatprep.subr.bf16.mxu0 0
        %593 = vmatpush1.bf16.msra.mxu0 %v578
        %594 = vmatprep.subr.bf16.mxu0 0
        %595 = vmatpush1.bf16.msra.mxu0 0
        %596 = vmatprep.subr.bf16.mxu0 0
        %597 = vmatpush1.bf16.msra.mxu0 0
        %598 = vmatprep.subr.bf16.mxu0 0
        %599 = vmatpush1.bf16.msra.mxu0 0
        %600 = vmatprep.subr.bf16.mxu0 0
        %601 = vmatpush1.bf16.msra.mxu0 0
        %602 = vmatprep.subr.bf16.mxu0 0
        %603 = vmatpush1.bf16.msra.mxu0 0
        %604 = vmatprep.subr.bf16.mxu0 0
        %605 = vmatpush1.bf16.msra.mxu0 0
        %606 = vmatprep.subr.bf16.mxu0 0
        %607 = vmatpush1.bf16.msra.mxu0 0
        %608 = vmatprep.subr.bf16.mxu0 0
        %609 = vmatpush1.bf16.msra.mxu0 0
        %610 = vmatprep.subr.bf16.mxu0 0
        %611 = vmatpush1.bf16.msra.mxu0 0
        %612 = vmatprep.subr.bf16.mxu0 0
        %613 = vmatpush1.bf16.msra.mxu0 0
        %614 = vmatprep.subr.bf16.mxu0 0
        %615 = vmatpush1.bf16.msra.mxu0 0
        %616 = vmatprep.subr.bf16.mxu0 0
        %617 = vmatpush1.bf16.msra.mxu0 0
        %618 = vmatprep.mubr.bf16.mxu0 0
        %619 = vmatmul.mubr.bf16.gmra.mrb[0].mxu0 %v584
        %v620 = vpop.f32.mrb[0].mxu0
        %v621 = vadd.f32 0.0, %v620
        %v622 = vpop.f32.mrb[0].mxu0
        %v623 = vpop.f32.mrb[0].mxu0
        %v624 = vadd.f32 0.0, %v623
        %v625 = vpop.f32.mrb[0].mxu0
        %626 = vdwg.mxu0
        %v627 = vadd.f32 %v541, %v621
        %v628 = vadd.f32 %v544, %v624
        %v629 = vld [vmem:[%s4] sm:$0x1]
        %v631 = vlaneseq
        %v632 = vshrl.u32 %v631, 7
        %v633 = vsub.s32 0, %v632
        %v634 = vrot.slane %v629, %v633
        %v636 = vadd.f32 %v627, %v634
        %v637 = vadd.f32 %v628, %v634
        %v638 = vmax.f32 %v636, 0.0
        %v639 = vmax.f32 %v637, 0.0
        %640 = vst [vmem:[#allocation3] sm:$0x1] 0.0
        %641 = vst [vmem:[#allocation3 + $0x11] sm:$0x1] 0.0
        %642 = vst [vmem:[#allocation3 + $0x1] sm:$0xff] %v638
        %643 = vst [vmem:[#allocation3 + $0x9] sm:$0xff] %v639
        %v644 = vld [vmem:[#allocation3] sm:$0xff]
        %v645 = vld [vmem:[#allocation3 + $0x8] sm:$0xff]
        %v646 = vpack.c.bf16 %v645, %v644
        %v647 = vld [vmem:[#allocation9] sm:$0xf]
        %v648 = vld [vmem:[#allocation9 + $0x4] sm:$0xf]
        %v649 = vld [vmem:[#allocation9 + $0x8] sm:$0xf]
        %v650 = vld [vmem:[#allocation9 + $0xc] sm:$0xf]
        %v651 = vld [vmem:[#allocation9 + $0x10] sm:$0xf]
        %v652 = vld [vmem:[#allocation9 + $0x14] sm:$0xf]
        %v653 = vld [vmem:[#allocation9 + $0x18] sm:$0xf]
        %v654 = vld [vmem:[#allocation9 + $0x1c] sm:$0xf]
        %v655 = vld [vmem:[#allocation9 + $0x20] sm:$0xf]
        %v656 = vld [vmem:[#allocation9 + $0x24] sm:$0xf]
        %v657 = vld [vmem:[#allocation9 + $0x28] sm:$0xf]
        %v658 = vld [vmem:[#allocation9 + $0x2c] sm:$0xf]
        %v659 = vld [vmem:[#allocation9 + $0x30] sm:$0xf]
        %v660 = vld [vmem:[#allocation9 + $0x34] sm:$0xf]
        %v661 = vld [vmem:[#allocation9 + $0x38] sm:$0xf]
        %v662 = vld [vmem:[#allocation9 + $0x3c] sm:$0xf]
        %v663 = vld [vmem:[#allocation3 + $0x1] sm:$0xff]
        %v664 = vld [vmem:[#allocation3 + $0x9] sm:$0xff]
        %v665 = vpack.c.bf16 %v664, %v663
        %s666 = scalar_lea.vmem [#allocation9], 64
        %v667 = vld [vmem:[%s666] sm:$0xf]
        %v668 = vld [vmem:[%s666 + $0x4] sm:$0xf]
        %v669 = vld [vmem:[%s666 + $0x8] sm:$0xf]
        %v670 = vld [vmem:[%s666 + $0xc] sm:$0xf]
        %v671 = vld [vmem:[%s666 + $0x10] sm:$0xf]
        %v672 = vld [vmem:[%s666 + $0x14] sm:$0xf]
        %v673 = vld [vmem:[%s666 + $0x18] sm:$0xf]
        %v674 = vld [vmem:[%s666 + $0x1c] sm:$0xf]
        %v675 = vld [vmem:[%s666 + $0x20] sm:$0xf]
        %v676 = vld [vmem:[%s666 + $0x24] sm:$0xf]
        %v677 = vld [vmem:[%s666 + $0x28] sm:$0xf]
        %v678 = vld [vmem:[%s666 + $0x2c] sm:$0xf]
        %v679 = vld [vmem:[%s666 + $0x30] sm:$0xf]
        %v680 = vld [vmem:[%s666 + $0x34] sm:$0xf]
        %v681 = vld [vmem:[%s666 + $0x38] sm:$0xf]
        %v682 = vld [vmem:[%s666 + $0x3c] sm:$0xf]
        %v699 = vunpack.c.l.b16 %v667
        %v700 = vunpack.c.l.b16 %v668
        %v701 = vunpack.c.l.b16 %v669
        %v702 = vunpack.c.l.b16 %v670
        %v703 = vunpack.c.l.b16 %v671
        %v704 = vunpack.c.l.b16 %v672
        %v705 = vunpack.c.l.b16 %v673
        %v706 = vunpack.c.l.b16 %v674
        %v707 = vunpack.c.l.b16 %v675
        %v708 = vunpack.c.l.b16 %v676
        %v709 = vunpack.c.l.b16 %v677
        %v710 = vunpack.c.l.b16 %v678
        %v711 = vunpack.c.l.b16 %v679
        %v712 = vunpack.c.l.b16 %v680
        %v713 = vunpack.c.l.b16 %v681
        %v714 = vunpack.c.l.b16 %v682
        %v715 = vpack.c.b16 %v700, %v699
        %v716 = vpack.c.b16 %v702, %v701
        %v717 = vpack.c.b16 %v704, %v703
        %v718 = vpack.c.b16 %v706, %v705
        %v719 = vpack.c.b16 %v708, %v707
        %v720 = vpack.c.b16 %v710, %v709
        %v721 = vpack.c.b16 %v712, %v711
        %v722 = vpack.c.b16 %v714, %v713
        %731 = vmatprep.subr.bf16.mxu0 0
        %732 = vmatpush1.bf16.msra.mxu0 %v715
        %733 = vmatprep.subr.bf16.mxu0 0
        %734 = vmatpush1.bf16.msra.mxu0 %v716
        %735 = vmatprep.subr.bf16.mxu0 0
        %736 = vmatpush1.bf16.msra.mxu0 %v717
        %737 = vmatprep.subr.bf16.mxu0 0
        %738 = vmatpush1.bf16.msra.mxu0 %v718
        %739 = vmatprep.subr.bf16.mxu0 0
        %740 = vmatpush1.bf16.msra.mxu0 %v719
        %741 = vmatprep.subr.bf16.mxu0 0
        %742 = vmatpush1.bf16.msra.mxu0 %v720
        %743 = vmatprep.subr.bf16.mxu0 0
        %744 = vmatpush1.bf16.msra.mxu0 %v721
        %745 = vmatprep.subr.bf16.mxu0 0
        %746 = vmatpush1.bf16.msra.mxu0 %v722
        %747 = vmatprep.subr.bf16.mxu0 0
        %748 = vmatpush1.bf16.msra.mxu0 0
        %749 = vmatprep.subr.bf16.mxu0 0
        %750 = vmatpush1.bf16.msra.mxu0 0
        %751 = vmatprep.subr.bf16.mxu0 0
        %752 = vmatpush1.bf16.msra.mxu0 0
        %753 = vmatprep.subr.bf16.mxu0 0
        %754 = vmatpush1.bf16.msra.mxu0 0
        %755 = vmatprep.subr.bf16.mxu0 0
        %756 = vmatpush1.bf16.msra.mxu0 0
        %757 = vmatprep.subr.bf16.mxu0 0
        %758 = vmatpush1.bf16.msra.mxu0 0
        %759 = vmatprep.subr.bf16.mxu0 0
        %760 = vmatpush1.bf16.msra.mxu0 0
        %761 = vmatprep.subr.bf16.mxu0 0
        %762 = vmatpush1.bf16.msra.mxu0 0
        %763 = vmatprep.mubr.bf16.mxu0 0
        %764 = vmatmul.mubr.bf16.gmra.mrb[0].mxu0 %v665
        %v765 = vpop.f32.mrb[0].mxu0
        %v766 = vadd.f32 0.0, %v765
        %v767 = vpop.f32.mrb[0].mxu0
        %v768 = vpop.f32.mrb[0].mxu0
        %v769 = vadd.f32 0.0, %v768
        %v770 = vpop.f32.mrb[0].mxu0
        %771 = vdwg.mxu0
        %v788 = vunpack.c.l.b16 %v647
        %v789 = vunpack.c.l.b16 %v648
        %v790 = vunpack.c.l.b16 %v649
        %v791 = vunpack.c.l.b16 %v650
        %v792 = vunpack.c.l.b16 %v651
        %v793 = vunpack.c.l.b16 %v652
        %v794 = vunpack.c.l.b16 %v653
        %v795 = vunpack.c.l.b16 %v654
        %v796 = vunpack.c.l.b16 %v655
        %v797 = vunpack.c.l.b16 %v656
        %v798 = vunpack.c.l.b16 %v657
        %v799 = vunpack.c.l.b16 %v658
        %v800 = vunpack.c.l.b16 %v659
        %v801 = vunpack.c.l.b16 %v660
        %v802 = vunpack.c.l.b16 %v661
        %v803 = vunpack.c.l.b16 %v662
        %v804 = vpack.c.b16 %v789, %v788
        %v805 = vpack.c.b16 %v791, %v790
        %v806 = vpack.c.b16 %v793, %v792
        %v807 = vpack.c.b16 %v795, %v794
        %v808 = vpack.c.b16 %v797, %v796
        %v809 = vpack.c.b16 %v799, %v798
        %v810 = vpack.c.b16 %v801, %v800
        %v811 = vpack.c.b16 %v803, %v802
        %820 = vmatprep.subr.bf16.mxu0 0
        %821 = vmatpush1.bf16.msra.mxu0 %v804
        %822 = vmatprep.subr.bf16.mxu0 0
        %823 = vmatpush1.bf16.msra.mxu0 %v805
        %824 = vmatprep.subr.bf16.mxu0 0
        %825 = vmatpush1.bf16.msra.mxu0 %v806
        %826 = vmatprep.subr.bf16.mxu0 0
        %827 = vmatpush1.bf16.msra.mxu0 %v807
        %828 = vmatprep.subr.bf16.mxu0 0
        %829 = vmatpush1.bf16.msra.mxu0 %v808
        %830 = vmatprep.subr.bf16.mxu0 0
        %831 = vmatpush1.bf16.msra.mxu0 %v809
        %832 = vmatprep.subr.bf16.mxu0 0
        %833 = vmatpush1.bf16.msra.mxu0 %v810
        %834 = vmatprep.subr.bf16.mxu0 0
        %835 = vmatpush1.bf16.msra.mxu0 %v811
        %836 = vmatprep.subr.bf16.mxu0 0
        %837 = vmatpush1.bf16.msra.mxu0 0
        %838 = vmatprep.subr.bf16.mxu0 0
        %839 = vmatpush1.bf16.msra.mxu0 0
        %840 = vmatprep.subr.bf16.mxu0 0
        %841 = vmatpush1.bf16.msra.mxu0 0
        %842 = vmatprep.subr.bf16.mxu0 0
        %843 = vmatpush1.bf16.msra.mxu0 0
        %844 = vmatprep.subr.bf16.mxu0 0
        %845 = vmatpush1.bf16.msra.mxu0 0
        %846 = vmatprep.subr.bf16.mxu0 0
        %847 = vmatpush1.bf16.msra.mxu0 0
        %848 = vmatprep.subr.bf16.mxu0 0
        %849 = vmatpush1.bf16.msra.mxu0 0
        %850 = vmatprep.subr.bf16.mxu0 0
        %851 = vmatpush1.bf16.msra.mxu0 0
        %852 = vmatprep.mubr.bf16.mxu0 0
        %853 = vmatmul.mubr.bf16.gmra.mrb[0].mxu0 %v646
        %v854 = vpop.f32.mrb[0].mxu0
        %v855 = vadd.f32 %v766, %v854
        %v856 = vpop.f32.mrb[0].mxu0
        %v857 = vpop.f32.mrb[0].mxu0
        %v858 = vadd.f32 %v769, %v857
        %v859 = vpop.f32.mrb[0].mxu0
        %860 = vdwg.mxu0
        %v861 = vld [vmem:[#allocation3 + $0x2] sm:$0xff]
        %v862 = vld [vmem:[#allocation3 + $0xa] sm:$0xff]
        %v863 = vpack.c.bf16 %v862, %v861
        %s864 = scalar_lea.vmem [#allocation9], 128
        %v865 = vld [vmem:[%s864] sm:$0xf]
        %v866 = vld [vmem:[%s864 + $0x4] sm:$0xf]
        %v867 = vld [vmem:[%s864 + $0x8] sm:$0xf]
        %v868 = vld [vmem:[%s864 + $0xc] sm:$0xf]
        %v869 = vld [vmem:[%s864 + $0x10] sm:$0xf]
        %v870 = vld [vmem:[%s864 + $0x14] sm:$0xf]
        %v871 = vld [vmem:[%s864 + $0x18] sm:$0xf]
        %v872 = vld [vmem:[%s864 + $0x1c] sm:$0xf]
        %v873 = vld [vmem:[%s864 + $0x20] sm:$0xf]
        %v874 = vld [vmem:[%s864 + $0x24] sm:$0xf]
        %v875 = vld [vmem:[%s864 + $0x28] sm:$0xf]
        %v876 = vld [vmem:[%s864 + $0x2c] sm:$0xf]
        %v877 = vld [vmem:[%s864 + $0x30] sm:$0xf]
        %v878 = vld [vmem:[%s864 + $0x34] sm:$0xf]
        %v879 = vld [vmem:[%s864 + $0x38] sm:$0xf]
        %v880 = vld [vmem:[%s864 + $0x3c] sm:$0xf]
        %v897 = vunpack.c.l.b16 %v865
        %v898 = vunpack.c.l.b16 %v866
        %v899 = vunpack.c.l.b16 %v867
        %v900 = vunpack.c.l.b16 %v868
        %v901 = vunpack.c.l.b16 %v869
        %v902 = vunpack.c.l.b16 %v870
        %v903 = vunpack.c.l.b16 %v871
        %v904 = vunpack.c.l.b16 %v872
        %v905 = vunpack.c.l.b16 %v873
        %v906 = vunpack.c.l.b16 %v874
        %v907 = vunpack.c.l.b16 %v875
        %v908 = vunpack.c.l.b16 %v876
        %v909 = vunpack.c.l.b16 %v877
        %v910 = vunpack.c.l.b16 %v878
        %v911 = vunpack.c.l.b16 %v879
        %v912 = vunpack.c.l.b16 %v880
        %v913 = vpack.c.b16 %v898, %v897
        %v914 = vpack.c.b16 %v900, %v899
        %v915 = vpack.c.b16 %v902, %v901
        %v916 = vpack.c.b16 %v904, %v903
        %v917 = vpack.c.b16 %v906, %v905
        %v918 = vpack.c.b16 %v908, %v907
        %v919 = vpack.c.b16 %v910, %v909
        %v920 = vpack.c.b16 %v912, %v911
        %929 = vmatprep.subr.bf16.mxu0 0
        %930 = vmatpush1.bf16.msra.mxu0 %v913
        %931 = vmatprep.subr.bf16.mxu0 0
        %932 = vmatpush1.bf16.msra.mxu0 %v914
        %933 = vmatprep.subr.bf16.mxu0 0
        %934 = vmatpush1.bf16.msra.mxu0 %v915
        %935 = vmatprep.subr.bf16.mxu0 0
        %936 = vmatpush1.bf16.msra.mxu0 %v916
        %937 = vmatprep.subr.bf16.mxu0 0
        %938 = vmatpush1.bf16.msra.mxu0 %v917
        %939 = vmatprep.subr.bf16.mxu0 0
        %940 = vmatpush1.bf16.msra.mxu0 %v918
        %941 = vmatprep.subr.bf16.mxu0 0
        %942 = vmatpush1.bf16.msra.mxu0 %v919
        %943 = vmatprep.subr.bf16.mxu0 0
        %944 = vmatpush1.bf16.msra.mxu0 %v920
        %945 = vmatprep.subr.bf16.mxu0 0
        %946 = vmatpush1.bf16.msra.mxu0 0
        %947 = vmatprep.subr.bf16.mxu0 0
        %948 = vmatpush1.bf16.msra.mxu0 0
        %949 = vmatprep.subr.bf16.mxu0 0
        %950 = vmatpush1.bf16.msra.mxu0 0
        %951 = vmatprep.subr.bf16.mxu0 0
        %952 = vmatpush1.bf16.msra.mxu0 0
        %953 = vmatprep.subr.bf16.mxu0 0
        %954 = vmatpush1.bf16.msra.mxu0 0
        %955 = vmatprep.subr.bf16.mxu0 0
        %956 = vmatpush1.bf16.msra.mxu0 0
        %957 = vmatprep.subr.bf16.mxu0 0
        %958 = vmatpush1.bf16.msra.mxu0 0
        %959 = vmatprep.subr.bf16.mxu0 0
        %960 = vmatpush1.bf16.msra.mxu0 0
        %961 = vmatprep.mubr.bf16.mxu0 0
        %962 = vmatmul.mubr.bf16.gmra.mrb[0].mxu0 %v863
        %v963 = vpop.f32.mrb[0].mxu0
        %v964 = vadd.f32 0.0, %v963
        %v965 = vpop.f32.mrb[0].mxu0
        %v966 = vpop.f32.mrb[0].mxu0
        %v967 = vadd.f32 0.0, %v966
        %v968 = vpop.f32.mrb[0].mxu0
        %969 = vdwg.mxu0
        %v970 = vadd.f32 %v855, %v964
        %v971 = vadd.f32 %v858, %v967
        %v972 = vld [vmem:[%s5] sm:$0x1]
        %v974 = vlaneseq
        %v975 = vshrl.u32 %v974, 7
        %v976 = vsub.s32 0, %v975
        %v977 = vrot.slane %v972, %v976
        %v979 = vadd.f32 %v970, %v977
        %v980 = vadd.f32 %v971, %v977
        %v981 = vmax.f32 %v979, 0.0
        %v982 = vmax.f32 %v980, 0.0
        %983 = vst [vmem:[%s371] sm:$0xff] %v981
        %984 = vst [vmem:[%s371 + $0x8] sm:$0xff] %v982
        %v985 = vld [vmem:[#allocation2] ss:$2 sm:$0xff]
        %v986 = vpack.c.bf16 %v985, %v985
        %v987 = vld [vmem:[#allocation10] sm:$0xf]
        %v988 = vld [vmem:[#allocation10 + $0x4] sm:$0xf]
        %v989 = vld [vmem:[#allocation10 + $0x8] sm:$0xf]
        %v990 = vld [vmem:[#allocation10 + $0xc] sm:$0xf]
        %v991 = vld [vmem:[#allocation10 + $0x10] sm:$0xf]
        %v992 = vld [vmem:[#allocation10 + $0x14] sm:$0xf]
        %v993 = vld [vmem:[#allocation10 + $0x18] sm:$0xf]
        %v994 = vld [vmem:[#allocation10 + $0x1c] sm:$0xf]
        %s995 = scalar_lea.vmem [#allocation2], 1
        %v996 = vld [vmem:[%s995] ss:$2 sm:$0xff]
        %v997 = vpack.c.bf16 %v996, %v996
        %s998 = scalar_lea.vmem [#allocation10], 32
        %v999 = vld [vmem:[%s998] sm:$0xf]
        %v1000 = vld [vmem:[%s998 + $0x4] sm:$0xf]
        %v1001 = vld [vmem:[%s998 + $0x8] sm:$0xf]
        %v1002 = vld [vmem:[%s998 + $0xc] sm:$0xf]
        %v1003 = vld [vmem:[%s998 + $0x10] sm:$0xf]
        %v1004 = vld [vmem:[%s998 + $0x14] sm:$0xf]
        %v1005 = vld [vmem:[%s998 + $0x18] sm:$0xf]
        %v1006 = vld [vmem:[%s998 + $0x1c] sm:$0xf]
        %v1015 = vunpack.c.l.b16 %v999
        %v1016 = vunpack.c.l.b16 %v1000
        %v1017 = vunpack.c.l.b16 %v1001
        %v1018 = vunpack.c.l.b16 %v1002
        %v1019 = vunpack.c.l.b16 %v1003
        %v1020 = vunpack.c.l.b16 %v1004
        %v1021 = vunpack.c.l.b16 %v1005
        %v1022 = vunpack.c.l.b16 %v1006
        %v1023 = vpack.c.b16 %v1016, %v1015
        %v1024 = vpack.c.b16 %v1018, %v1017
        %v1025 = vpack.c.b16 %v1020, %v1019
        %v1026 = vpack.c.b16 %v1022, %v1021
        %v1032 = vsel %vm385, %v997, 0
        %1034 = vmatprep.subr.bf16.mxu0 0
        %1035 = vmatpush1.bf16.msra.mxu0 %v1023
        %1036 = vmatprep.subr.bf16.mxu0 0
        %1037 = vmatpush1.bf16.msra.mxu0 %v1024
        %1038 = vmatprep.subr.bf16.mxu0 0
        %1039 = vmatpush1.bf16.msra.mxu0 %v1025
        %1040 = vmatprep.subr.bf16.mxu0 0
        %1041 = vmatpush1.bf16.msra.mxu0 %v1026
        %1042 = vmatprep.subr.bf16.mxu0 0
        %1043 = vmatpush1.bf16.msra.mxu0 0
        %1044 = vmatprep.subr.bf16.mxu0 0
        %1045 = vmatpush1.bf16.msra.mxu0 0
        %1046 = vmatprep.subr.bf16.mxu0 0
        %1047 = vmatpush1.bf16.msra.mxu0 0
        %1048 = vmatprep.subr.bf16.mxu0 0
        %1049 = vmatpush1.bf16.msra.mxu0 0
        %1050 = vmatprep.subr.bf16.mxu0 0
        %1051 = vmatpush1.bf16.msra.mxu0 0
        %1052 = vmatprep.subr.bf16.mxu0 0
        %1053 = vmatpush1.bf16.msra.mxu0 0
        %1054 = vmatprep.subr.bf16.mxu0 0
        %1055 = vmatpush1.bf16.msra.mxu0 0
        %1056 = vmatprep.subr.bf16.mxu0 0
        %1057 = vmatpush1.bf16.msra.mxu0 0
        %1058 = vmatprep.subr.bf16.mxu0 0
        %1059 = vmatpush1.bf16.msra.mxu0 0
        %1060 = vmatprep.subr.bf16.mxu0 0
        %1061 = vmatpush1.bf16.msra.mxu0 0
        %1062 = vmatprep.subr.bf16.mxu0 0
        %1063 = vmatpush1.bf16.msra.mxu0 0
        %1064 = vmatprep.subr.bf16.mxu0 0
        %1065 = vmatpush1.bf16.msra.mxu0 0
        %1066 = vmatprep.mubr.bf16.mxu0 0
        %1067 = vmatmul.mubr.bf16.gmra.mrb[0].mxu0 %v1032
        %v1068 = vpop.f32.mrb[0].mxu0
        %v1069 = vadd.f32 0.0, %v1068
        %v1070 = vpop.f32.mrb[0].mxu0
        %v1071 = vpop.f32.mrb[0].mxu0
        %v1072 = vpop.f32.mrb[0].mxu0
        %1073 = vdwg.mxu0
        %v1082 = vunpack.c.l.b16 %v987
        %v1083 = vunpack.c.l.b16 %v988
        %v1084 = vunpack.c.l.b16 %v989
        %v1085 = vunpack.c.l.b16 %v990
        %v1086 = vunpack.c.l.b16 %v991
        %v1087 = vunpack.c.l.b16 %v992
        %v1088 = vunpack.c.l.b16 %v993
        %v1089 = vunpack.c.l.b16 %v994
        %v1090 = vpack.c.b16 %v1083, %v1082
        %v1091 = vpack.c.b16 %v1085, %v1084
        %v1092 = vpack.c.b16 %v1087, %v1086
        %v1093 = vpack.c.b16 %v1089, %v1088
        %v1099 = vsel %vm385, %v986, 0
        %1101 = vmatprep.subr.bf16.mxu0 0
        %1102 = vmatpush1.bf16.msra.mxu0 %v1090
        %1103 = vmatprep.subr.bf16.mxu0 0
        %1104 = vmatpush1.bf16.msra.mxu0 %v1091
        %1105 = vmatprep.subr.bf16.mxu0 0
        %1106 = vmatpush1.bf16.msra.mxu0 %v1092
        %1107 = vmatprep.subr.bf16.mxu0 0
        %1108 = vmatpush1.bf16.msra.mxu0 %v1093
        %1109 = vmatprep.subr.bf16.mxu0 0
        %1110 = vmatpush1.bf16.msra.mxu0 0
        %1111 = vmatprep.subr.bf16.mxu0 0
        %1112 = vmatpush1.bf16.msra.mxu0 0
        %1113 = vmatprep.subr.bf16.mxu0 0
        %1114 = vmatpush1.bf16.msra.mxu0 0
        %1115 = vmatprep.subr.bf16.mxu0 0
        %1116 = vmatpush1.bf16.msra.mxu0 0
        %1117 = vmatprep.subr.bf16.mxu0 0
        %1118 = vmatpush1.bf16.msra.mxu0 0
        %1119 = vmatprep.subr.bf16.mxu0 0
        %1120 = vmatpush1.bf16.msra.mxu0 0
        %1121 = vmatprep.subr.bf16.mxu0 0
        %1122 = vmatpush1.bf16.msra.mxu0 0
        %1123 = vmatprep.subr.bf16.mxu0 0
        %1124 = vmatpush1.bf16.msra.mxu0 0
        %1125 = vmatprep.subr.bf16.mxu0 0
        %1126 = vmatpush1.bf16.msra.mxu0 0
        %1127 = vmatprep.subr.bf16.mxu0 0
        %1128 = vmatpush1.bf16.msra.mxu0 0
        %1129 = vmatprep.subr.bf16.mxu0 0
        %1130 = vmatpush1.bf16.msra.mxu0 0
        %1131 = vmatprep.subr.bf16.mxu0 0
        %1132 = vmatpush1.bf16.msra.mxu0 0
        %1133 = vmatprep.mubr.bf16.mxu0 0
        %1134 = vmatmul.mubr.bf16.gmra.mrb[0].mxu0 %v1099
        %v1135 = vpop.f32.mrb[0].mxu0
        %v1136 = vadd.f32 %v1069, %v1135
        %v1137 = vpop.f32.mrb[0].mxu0
        %v1138 = vpop.f32.mrb[0].mxu0
        %v1139 = vpop.f32.mrb[0].mxu0
        %1140 = vdwg.mxu0
        %s1141 = scalar_lea.vmem [#allocation2], 2
        %v1142 = vld [vmem:[%s1141] ss:$2 sm:$0xff]
        %v1143 = vpack.c.bf16 %v1142, %v1142
        %s1144 = scalar_lea.vmem [#allocation10], 64
        %v1145 = vld [vmem:[%s1144] sm:$0xf]
        %v1146 = vld [vmem:[%s1144 + $0x4] sm:$0xf]
        %v1147 = vld [vmem:[%s1144 + $0x8] sm:$0xf]
        %v1148 = vld [vmem:[%s1144 + $0xc] sm:$0xf]
        %v1149 = vld [vmem:[%s1144 + $0x10] sm:$0xf]
        %v1150 = vld [vmem:[%s1144 + $0x14] sm:$0xf]
        %v1151 = vld [vmem:[%s1144 + $0x18] sm:$0xf]
        %v1152 = vld [vmem:[%s1144 + $0x1c] sm:$0xf]
        %v1161 = vunpack.c.l.b16 %v1145
        %v1162 = vunpack.c.l.b16 %v1146
        %v1163 = vunpack.c.l.b16 %v1147
        %v1164 = vunpack.c.l.b16 %v1148
        %v1165 = vunpack.c.l.b16 %v1149
        %v1166 = vunpack.c.l.b16 %v1150
        %v1167 = vunpack.c.l.b16 %v1151
        %v1168 = vunpack.c.l.b16 %v1152
        %v1169 = vpack.c.b16 %v1162, %v1161
        %v1170 = vpack.c.b16 %v1164, %v1163
        %v1171 = vpack.c.b16 %v1166, %v1165
        %v1172 = vpack.c.b16 %v1168, %v1167
        %v1178 = vsel %vm385, %v1143, 0
        %1180 = vmatprep.subr.bf16.mxu0 0
        %1181 = vmatpush1.bf16.msra.mxu0 %v1169
        %1182 = vmatprep.subr.bf16.mxu0 0
        %1183 = vmatpush1.bf16.msra.mxu0 %v1170
        %1184 = vmatprep.subr.bf16.mxu0 0
        %1185 = vmatpush1.bf16.msra.mxu0 %v1171
        %1186 = vmatprep.subr.bf16.mxu0 0
        %1187 = vmatpush1.bf16.msra.mxu0 %v1172
        %1188 = vmatprep.subr.bf16.mxu0 0
        %1189 = vmatpush1.bf16.msra.mxu0 0
        %1190 = vmatprep.subr.bf16.mxu0 0
        %1191 = vmatpush1.bf16.msra.mxu0 0
        %1192 = vmatprep.subr.bf16.mxu0 0
        %1193 = vmatpush1.bf16.msra.mxu0 0
        %1194 = vmatprep.subr.bf16.mxu0 0
        %1195 = vmatpush1.bf16.msra.mxu0 0
        %1196 = vmatprep.subr.bf16.mxu0 0
        %1197 = vmatpush1.bf16.msra.mxu0 0
        %1198 = vmatprep.subr.bf16.mxu0 0
        %1199 = vmatpush1.bf16.msra.mxu0 0
        %1200 = vmatprep.subr.bf16.mxu0 0
        %1201 = vmatpush1.bf16.msra.mxu0 0
        %1202 = vmatprep.subr.bf16.mxu0 0
        %1203 = vmatpush1.bf16.msra.mxu0 0
        %1204 = vmatprep.subr.bf16.mxu0 0
        %1205 = vmatpush1.bf16.msra.mxu0 0
        %1206 = vmatprep.subr.bf16.mxu0 0
        %1207 = vmatpush1.bf16.msra.mxu0 0
        %1208 = vmatprep.subr.bf16.mxu0 0
        %1209 = vmatpush1.bf16.msra.mxu0 0
        %1210 = vmatprep.subr.bf16.mxu0 0
        %1211 = vmatpush1.bf16.msra.mxu0 0
        %1212 = vmatprep.mubr.bf16.mxu0 0
        %1213 = vmatmul.mubr.bf16.gmra.mrb[0].mxu0 %v1178
        %v1214 = vpop.f32.mrb[0].mxu0
        %v1215 = vadd.f32 0.0, %v1214
        %v1216 = vpop.f32.mrb[0].mxu0
        %v1217 = vpop.f32.mrb[0].mxu0
        %v1218 = vpop.f32.mrb[0].mxu0
        %1219 = vdwg.mxu0
        %v1220 = vadd.f32 %v1136, %v1215
        %v1221 = vld [vmem:[%s6] sm:$0x1]
        %v1223 = vlaneseq
        %v1224 = vshrl.u32 %v1223, 7
        %v1225 = vsub.s32 0, %v1224
        %v1226 = vrot.slane %v1221, %v1225
        %v1228 = vadd.f32 %v1220, %v1226
        %v1229 = vmax.f32 %v1228, 0.0
        %1230 = vst.msk [vmem:[%s378] sm:$0xff] %vm385, %v1229
        %s1231 = sand.u32 %s191, 1
        %s1232 = scalar_lea.sflag [#allocation6], %s1231
        %s1233 = sand.u32 %s191, 1
        %s1234 = smul.addr %s1233, 16
        %s1235 = scalar_lea.vmem [#allocation12], %s1234
        %s1236 = sand.u32 %s217, 1
        %s1237 = scalar_lea.sflag [#allocation14], %s1236
        %s1238 = sand.u32 %s217, 1
        %s1239 = smul.addr %s1238, 8
        %s1240 = scalar_lea.vmem [#allocation13], %s1239
        // Predicated region
        $region65: #{tpu_custom_call.1} parent=47 // pred_check
          %p1241 = pneg %p201
        $region66: #{tpu_custom_call.1} parent=47 // pred_check_branch
          %1243 = sbr.rel (%p1241) target = $region68
        $region67: #{tpu_custom_call.1} parent=47 // pred_region
          %s1245 = ssub.s32 256, 256
          %1246 = vsyncadd %s1232, %s1245
          %s1247 = smul.addr %s31, 2
          %s1248 = smul.addr %s1247, 128
          %s1249 = scalar_lea.hbm %s7, %s1248
          %s1250 = sshll.u32 %s1235, 4
          %s1251 = int_to_ptr.vmem [resolvable:$true] %s1250
          %1256 = dma.vmem_to_hbm [thread:$0]  %s1251, 256, %s1249, %s1232, 128, 128, 8
        $region68: #{tpu_custom_call.1} parent=47 // pred_fallthru
          _
        // Predicated region
        $region69: #{tpu_custom_call.1} parent=47 // pred_check
          %p1257 = pneg %p227
        $region70: #{tpu_custom_call.1} parent=47 // pred_check_branch
          %1259 = sbr.rel (%p1257) target = $region72
        $region71: #{tpu_custom_call.1} parent=47 // pred_region
          %s1261 = ssub.s32 128, 128
          %1262 = vsyncadd %s1237, %s1261
          %s1263 = smul.addr %s31, 128
          %s1264 = scalar_lea.hbm %s8, %s1263
          %s1266 = sshll.u32 %s1240, 4
          %s1267 = int_to_ptr.vmem [resolvable:$true] %s1266
          %1269 = dma.vmem_to_hbm [thread:$0]  %s1267, 128, %s1264, %s1237
        $region72: #{tpu_custom_call.1} parent=47 // pred_fallthru
          _
      $region48: #{tpu_custom_call.1} parent=5 // pred_fallthru
        _
      %p1270 = scmp.le.s32.totalorder 2, %s26
      // Predicated region
      $region73: #{tpu_custom_call.1} parent=5 // pred_check
        %p1271 = pneg %p1270
      $region74: #{tpu_custom_call.1} parent=5 // pred_check_branch
        %1273 = sbr.rel (%p1271) target = $region76
      $region75: #{tpu_custom_call.1} parent=5 // pred_region
        %s1274 = ssub.s32 %s26, 2
        // Predicated region
        $region77: #{tpu_custom_call.1} parent=75 // pred_check
          %p1275 = pneg %p207
        $region78: #{tpu_custom_call.1} parent=75 // pred_check_branch
          %1277 = sbr.rel (%p1275) target = $region80
        $region79: #{tpu_custom_call.1} parent=75 // pred_region
          %s1278 = sand.u32 %s192, 1
          %s1279 = scalar_lea.sflag [#allocation6], %s1278
          %s1280 = sand.u32 %s192, 1
          %s1281 = smul.addr %s1280, 16
          %s1282 = scalar_lea.vmem [#allocation12], %s1281
          %1283 = dma.done %s1279, 256
        $region80: #{tpu_custom_call.1} parent=75 // pred_fallthru
          _
        // Predicated region
        $region81: #{tpu_custom_call.1} parent=75 // pred_check
          %p1284 = pneg %p233
        $region82: #{tpu_custom_call.1} parent=75 // pred_check_branch
          %1286 = sbr.rel (%p1284) target = $region84
        $region83: #{tpu_custom_call.1} parent=75 // pred_region
          %s1287 = sand.u32 %s218, 1
          %s1288 = scalar_lea.sflag [#allocation14], %s1287
          %s1289 = sand.u32 %s218, 1
          %s1290 = smul.addr %s1289, 8
          %s1291 = scalar_lea.vmem [#allocation13], %s1290
          %1292 = dma.done %s1288, 128
        $region84: #{tpu_custom_call.1} parent=75 // pred_fallthru
          _
      $region76: #{tpu_custom_call.1} parent=5 // pred_fallthru
        _
    $region6: #{tpu_custom_call.1} parent=1 // loop_footer
      %s30 = sadd.s32 1, %s26
    $region7: #{tpu_custom_call.1} parent=1 // loop_footer_branch
      %25 = sbr.rel target = $region3
    $region8: #{tpu_custom_call.1} parent=1 // loop_exit
      _
    %1293 = vsyncpa [#allocation5], 1
    %s1294 = scalar_lea.sflag [#allocation5], 1
    %1295 = vsyncpa %s1294, 1
    %1296 = vsyncpa [#allocation8], 1
    %1297 = vsyncpa [#allocation11], 1
    %1298 = vsyncpa [#allocation6], 1
    %s1299 = scalar_lea.sflag [#allocation6], 1
    %1300 = vsyncpa %s1299, 1
    %1301 = vsyncpa [#allocation14], 1
    %s1302 = scalar_lea.sflag [#allocation14], 1
    %1303 = vsyncpa %s1302, 1

</llo_original>
